<compile_context>
chip_gen: v7x
topology: tpu7x:2x2x1
jax: 0.10.0
libtpu: 0.0.40
codegen_flags: <defaults>
</compile_context>

<pallas_src>
import functools

import jax
import jax.numpy as jnp
import numpy as np
from jax.experimental import pallas as pl
from jax.experimental.pallas import tpu as pltpu


def _decoder_band_kernel(x_ref, mask_ref, w1_ref, b1_ref, w2_ref, b2_ref,
                         o_ref, *, W, band):
    """One (image, row-band) step of ReLU(deconv4x4s2(ReLU(conv3x3(x)))).

    Layout: channel-major, flattened padded spatial (row stride Wp = W + 2) in
    the lane dimension.  A conv tap at (ky, kx) is the flat slice shifted by
    ky*Wp + kx; wrap-around "junk" columns and out-of-image halo rows are
    zeroed by `mask`, which makes them exactly the zero padding the transposed
    conv needs.
    """
    Wp = W + 2                    # flat row stride (1-col zero pad each side)
    SY = (band + 2) * Wp + 2      # embedded conv1 output (band+2 rows + slack)
    SZ = band * Wp                # embedded deconv output (band rows)
    Cin = x_ref.shape[0]
    Cmid = w1_ref.shape[0]
    Cout = o_ref.shape[1]

    # ---- ConvRelu: 3x3 conv as 9 MXU-accumulated shifted flat slices --------
    # (register-only: no im2col slab, no masked stores; MXU has huge slack at
    #  these channel counts so splitting K across taps is free)
    acc = jnp.zeros((Cmid, SY), jnp.float32)
    for ky in range(3):
        for kx in range(3):
            t = ky * 3 + kx
            sh = ky * Wp + kx
            acc = acc + jnp.dot(w1_ref[:, t * Cin:(t + 1) * Cin],
                                x_ref[:, sh:sh + SY],
                                preferred_element_type=jnp.float32)
    # bias + ReLU in f32; mask zeroes junk columns / out-of-image halo rows.
    y = (jnp.maximum(acc + b1_ref[...], 0.0) * mask_ref[...]).astype(jnp.bfloat16)

    # ---- ConvTranspose2d(4, s=2, p=1) + ReLU: 4 dense per-phase matmuls -----
    # phase (pi, pj) produces output pixels (2m+pi, 2n+pj); its 2x2 taps read
    # the masked conv output at flat shifts (pi+dy)*Wp + (pj+dx).
    for pi in range(2):
        for pj in range(2):
            ph = pi * 2 + pj
            w2p = w2_ref[ph]                                   # (Cout, 4*Cmid)
            accz = jnp.zeros((Cout, SZ), jnp.float32)
            for dy in range(2):
                for dx in range(2):
                    q = dy * 2 + dx
                    sh = (pi + dy) * Wp + (pj + dx)
                    accz = accz + jnp.dot(w2p[:, q * Cmid:(q + 1) * Cmid],
                                          y[:, sh:sh + SZ],
                                          preferred_element_type=jnp.float32)
            # lane-dense store: last dim SZ = band*(W+2) >= 128.
            o_ref[ph] = jnp.maximum(accz + b2_ref[...], 0.0).astype(o_ref.dtype)


@jax.jit
def decoder_block_forward(x_nchw, params):
    """DecoderBlock(is_deconv=True).forward as a single fused Pallas kernel."""
    conv_w, conv_b, deconv_w, deconv_b = params
    Cmid, Cin = conv_w.shape[0], conv_w.shape[1]
    Cout = deconv_w.shape[1]
    B, _, H, W = x_nchw.shape

    band = 8 if H % 8 == 0 else H          # y rows per grid step (VMEM-bounded)
    n_bands = H // band
    Wp = W + 2
    SY = (band + 2) * Wp + 2               # embedded conv1 output length
    SZ = band * Wp                         # embedded deconv output length
    Sx = ((band + 4) * Wp + 4 + 127) // 128 * 128   # band input, lane-rounded

    # ---- input: bf16, zero pad (2 rows / 1 col), flatten spatial, cut into
    #      overlapping row bands so every grid step is fully independent ------
    x = x_nchw.astype(jnp.bfloat16)
    xpad = jnp.pad(x, ((0, 0), (0, 0), (2, 2), (1, 1)))       # (B,Cin,H+4,W+2)
    xflat = xpad.reshape(B, Cin, (H + 4) * Wp)
    xflat = jnp.pad(xflat, ((0, 0), (0, 0), (1, Sx - (band + 4) * Wp - 1)))
    x_banded = jnp.stack(
        [xflat[:, :, s * band * Wp: s * band * Wp + Sx] for s in range(n_bands)],
        axis=1)                                                # (B,nb,Cin,Sx)

    # ---- validity mask for the embedded conv1 output: zero at the flat
    #      wrap-around columns (c=0, c=W+1 of every row) and at halo rows that
    #      fall outside the image; those zeros ARE the deconv's padding. ------
    pos = np.arange(SY)
    c = pos % Wp
    r = pos // Wp
    base = ((c >= 1) & (c <= W) & (r <= band + 1)).astype(np.float32)
    m = np.tile(base, (n_bands, 1))
    m[0] *= (r >= 1).astype(np.float32)        # band 0: row r=0 is y[-1]
    m[-1] *= (r <= band).astype(np.float32)    # last band: row band+1 is y[H]
    mask = jnp.asarray(m).reshape(n_bands, 1, SY)

    # ---- conv1 weights: (Cmid, Cin, 3, 3) -> (Cmid, 9*Cin), tap-major -------
    w1 = jnp.transpose(conv_w, (0, 2, 3, 1)).reshape(Cmid, 9 * Cin)
    w1 = w1.astype(jnp.bfloat16)
    b1 = conv_b.reshape(Cmid, 1).astype(jnp.float32)

    # ---- deconv weights: 4 dense per-phase (Cout, 4*Cmid) matrices ----------
    #  out[2m+pi, 2n+pj, co] = sum_{dy,dx,ci} yp[m+pi+dy, n+pj+dx, ci]
    #                                         * Wd[ci, co, 3-pi-2dy, 3-pj-2dx]
    w2 = jnp.stack([
        jnp.stack([
            jnp.concatenate(
                [deconv_w[:, :, 3 - pi - 2 * dy, 3 - pj - 2 * dx].T
                 for dy in range(2) for dx in range(2)], axis=1)
            for pj in range(2)], axis=0)
        for pi in range(2)], axis=0)                   # (2, 2, Cout, 4*Cmid)
    w2 = w2.reshape(4, Cout, 4 * Cmid).astype(jnp.bfloat16)
    b2 = deconv_b.reshape(Cout, 1).astype(jnp.float32)

    kernel = functools.partial(_decoder_band_kernel, W=W, band=band)
    out_emb = pl.pallas_call(
        kernel,
        out_shape=jax.ShapeDtypeStruct((B, n_bands, 4, Cout, SZ), jnp.float32),
        grid=(B, n_bands),
        in_specs=[
            pl.BlockSpec((pl.Squeezed(), pl.Squeezed(), Cin, Sx),
                         lambda b, s: (b, s, 0, 0)),
            pl.BlockSpec((pl.Squeezed(), 1, SY), lambda b, s: (s, 0, 0)),
            pl.BlockSpec((Cmid, 9 * Cin), lambda b, s: (0, 0)),
            pl.BlockSpec((Cmid, 1), lambda b, s: (0, 0)),
            pl.BlockSpec((4, Cout, 4 * Cmid), lambda b, s: (0, 0, 0)),
            pl.BlockSpec((Cout, 1), lambda b, s: (0, 0)),
        ],
        out_specs=pl.BlockSpec((pl.Squeezed(), pl.Squeezed(), 4, Cout, SZ),
                               lambda b, s: (b, s, 0, 0, 0)),
        compiler_params=pltpu.CompilerParams(
            dimension_semantics=("parallel", "parallel"),
            vmem_limit_bytes=32 * 1024 * 1024),
    )(x_banded, mask, w1, b1, w2, b2)

    # ---- single output-layout pass: drop wrap-around columns, interleave the
    #      four sub-pixel phases, convert to NCHW for the PyTorch interface.
    #      (Disappears entirely if the downstream consumes the kernel layout.)
    z = out_emb.reshape(B, n_bands, 2, 2, Cout, band, Wp)[..., :W]
    z = jnp.transpose(z, (0, 4, 1, 5, 2, 6, 3))    # (B,Cout,nb,u,pi,n,pj)
    return z.reshape(B, Cout, 2 * H, 2 * W)


def ref_forward(x_nchw, params):
    """Pure-JAX f32 reference (matches PyTorch semantics) for verification."""
    conv_w, conv_b, deconv_w, deconv_b = params
    y = jax.lax.conv_general_dilated(
        x_nchw.astype(jnp.float32), conv_w, (1, 1), ((1, 1), (1, 1)),
        dimension_numbers=("NCHW", "OIHW", "NCHW"))
    y = jax.nn.relu(y + conv_b[None, :, None, None])
    z = jax.lax.conv_general_dilated(
        y, deconv_w[:, :, ::-1, ::-1], (1, 1), ((2, 2), (2, 2)),
        lhs_dilation=(2, 2),
        dimension_numbers=("NCHW", "IOHW", "NCHW"))
    z = jax.nn.relu(z + deconv_b[None, :, None, None])
    return z


def init_params(key, in_channels, middle_channels, out_channels):
    k1, k2, k3, k4 = jax.random.split(key, 4)
    conv_w = 0.1 * jax.random.normal(
        k1, (middle_channels, in_channels, 3, 3), jnp.float32)
    conv_b = 0.1 * jax.random.normal(k2, (middle_channels,), jnp.float32)
    deconv_w = 0.1 * jax.random.normal(
        k3, (middle_channels, out_channels, 4, 4), jnp.float32)
    deconv_b = 0.1 * jax.random.normal(k4, (out_channels,), jnp.float32)
    return conv_w, conv_b, deconv_w, deconv_b


if __name__ == "__main__":
    key = jax.random.PRNGKey(0)
    kx, kp = jax.random.split(key)

    B, Cin, H, W = 2, 4, 16, 16
    Cmid, Cout = 8, 4

    x = jax.random.normal(kx, (B, Cin, H, W), jnp.float32)
    params = init_params(kp, Cin, Cmid, Cout)

    out = jax.block_until_ready(decoder_block_forward(x, params))
    ref = jax.block_until_ready(ref_forward(x, params))

    assert out.shape == (B, Cout, 2 * H, 2 * W), out.shape
    max_err = float(jnp.max(jnp.abs(out - ref)))
    # bf16 MXU inputs with f32 accumulation -> loosened tolerance vs f32 ref.
    assert jnp.allclose(out, ref, atol=5e-2, rtol=5e-2), max_err
    print("KERNEL_OK")
</pallas_src>

<mosaic_0001>
module attributes {stable_mosaic.version = 11 : i64} {
  func.func @_decoder_band_kernel(%arg0: i32, %arg1: i32, %arg2: memref<1x1x4x256xbf16, #tpu.memory_space<vmem>>, %arg3: memref<1x1x182xf32, #tpu.memory_space<vmem>>, %arg4: memref<8x36xbf16, #tpu.memory_space<vmem>>, %arg5: memref<8x1xf32, #tpu.memory_space<vmem>>, %arg6: memref<4x4x32xbf16, #tpu.memory_space<vmem>>, %arg7: memref<4x1xf32, #tpu.memory_space<vmem>>, %arg8: memref<1x1x4x4x144xf32, #tpu.memory_space<vmem>>) attributes {dimension_semantics = [#tpu.dimension_semantics<parallel>, #tpu.dimension_semantics<parallel>], iteration_bounds = array<i64: 2, 2>, scalar_prefetch = 0 : i64, scratch_operands = 0 : i64, tpu.core_type = #tpu.core_type<tc>, window_params = [{transform_indices = @transform_0, window_bounds = array<i64: 1, 1, 4, 256>}, {transform_indices = @transform_1, window_bounds = array<i64: 1, 1, 182>}, {pipeline_mode = #tpu.pipeline_mode<synchronous>, transform_indices = @transform_2, window_bounds = array<i64: 8, 36>}, {pipeline_mode = #tpu.pipeline_mode<synchronous>, transform_indices = @transform_3, window_bounds = array<i64: 8, 1>}, {pipeline_mode = #tpu.pipeline_mode<synchronous>, transform_indices = @transform_4, window_bounds = array<i64: 4, 4, 32>}, {pipeline_mode = #tpu.pipeline_mode<synchronous>, transform_indices = @transform_5, window_bounds = array<i64: 4, 1>}, {transform_indices = @transform_6, window_bounds = array<i64: 1, 1, 4, 4, 144>}]} {
    %cst = arith.constant 0.000000e+00 : f32
    %0 = vector.broadcast %cst : f32 to vector<8x182xf32>
    %c0 = arith.constant 0 : index
    %c0_0 = arith.constant 0 : index
    %1 = vector.load %arg4[%c0, %c0_0] : memref<8x36xbf16, #tpu.memory_space<vmem>>, vector<8x4xbf16>
    %c0_1 = arith.constant 0 : index
    %c0_2 = arith.constant 0 : index
    %c0_3 = arith.constant 0 : index
    %c0_4 = arith.constant 0 : index
    %2 = vector.load %arg2[%c0_1, %c0_2, %c0_3, %c0_4] : memref<1x1x4x256xbf16, #tpu.memory_space<vmem>>, vector<1x1x4x182xbf16>
    %3 = vector.shape_cast %2 : vector<1x1x4x182xbf16> to vector<4x182xbf16>
    %cst_5 = arith.constant dense<0.000000e+00> : vector<8x182xf32>
    %4 = tpu.matmul %1, %3, %cst_5 {dimension_numbers = #tpu.dot_dimension_numbers<[1], [0], [0], [1], [0, 0, 1, 1], [], []>} : vector<8x4xbf16>, vector<4x182xbf16>, vector<8x182xf32> -> vector<8x182xf32>
    %5 = arith.addf %0, %4 : vector<8x182xf32>
    %c0_6 = arith.constant 0 : index
    %c4 = arith.constant 4 : index
    %6 = vector.load %arg4[%c0_6, %c4] : memref<8x36xbf16, #tpu.memory_space<vmem>>, vector<8x4xbf16>
    %c0_7 = arith.constant 0 : index
    %c0_8 = arith.constant 0 : index
    %c0_9 = arith.constant 0 : index
    %c1 = arith.constant 1 : index
    %7 = vector.load %arg2[%c0_7, %c0_8, %c0_9, %c1] : memref<1x1x4x256xbf16, #tpu.memory_space<vmem>>, vector<1x1x4x182xbf16>
    %8 = vector.shape_cast %7 : vector<1x1x4x182xbf16> to vector<4x182xbf16>
    %cst_10 = arith.constant dense<0.000000e+00> : vector<8x182xf32>
    %9 = tpu.matmul %6, %8, %cst_10 {dimension_numbers = #tpu.dot_dimension_numbers<[1], [0], [0], [1], [0, 0, 1, 1], [], []>} : vector<8x4xbf16>, vector<4x182xbf16>, vector<8x182xf32> -> vector<8x182xf32>
    %10 = arith.addf %5, %9 : vector<8x182xf32>
    %c0_11 = arith.constant 0 : index
    %c8 = arith.constant 8 : index
    %11 = vector.load %arg4[%c0_11, %c8] : memref<8x36xbf16, #tpu.memory_space<vmem>>, vector<8x4xbf16>
    %c0_12 = arith.constant 0 : index
    %c0_13 = arith.constant 0 : index
    %c0_14 = arith.constant 0 : index
    %c2 = arith.constant 2 : index
    %12 = vector.load %arg2[%c0_12, %c0_13, %c0_14, %c2] : memref<1x1x4x256xbf16, #tpu.memory_space<vmem>>, vector<1x1x4x182xbf16>
    %13 = vector.shape_cast %12 : vector<1x1x4x182xbf16> to vector<4x182xbf16>
    %cst_15 = arith.constant dense<0.000000e+00> : vector<8x182xf32>
    %14 = tpu.matmul %11, %13, %cst_15 {dimension_numbers = #tpu.dot_dimension_numbers<[1], [0], [0], [1], [0, 0, 1, 1], [], []>} : vector<8x4xbf16>, vector<4x182xbf16>, vector<8x182xf32> -> vector<8x182xf32>
    %15 = arith.addf %10, %14 : vector<8x182xf32>
    %c0_16 = arith.constant 0 : index
    %c12 = arith.constant 12 : index
    %16 = vector.load %arg4[%c0_16, %c12] : memref<8x36xbf16, #tpu.memory_space<vmem>>, vector<8x4xbf16>
    %c0_17 = arith.constant 0 : index
    %c0_18 = arith.constant 0 : index
    %c0_19 = arith.constant 0 : index
    %c18 = arith.constant 18 : index
    %17 = vector.load %arg2[%c0_17, %c0_18, %c0_19, %c18] : memref<1x1x4x256xbf16, #tpu.memory_space<vmem>>, vector<1x1x4x182xbf16>
    %18 = vector.shape_cast %17 : vector<1x1x4x182xbf16> to vector<4x182xbf16>
    %cst_20 = arith.constant dense<0.000000e+00> : vector<8x182xf32>
    %19 = tpu.matmul %16, %18, %cst_20 {dimension_numbers = #tpu.dot_dimension_numbers<[1], [0], [0], [1], [0, 0, 1, 1], [], []>} : vector<8x4xbf16>, vector<4x182xbf16>, vector<8x182xf32> -> vector<8x182xf32>
    %20 = arith.addf %15, %19 : vector<8x182xf32>
    %c0_21 = arith.constant 0 : index
    %c16 = arith.constant 16 : index
    %21 = vector.load %arg4[%c0_21, %c16] : memref<8x36xbf16, #tpu.memory_space<vmem>>, vector<8x4xbf16>
    %c0_22 = arith.constant 0 : index
    %c0_23 = arith.constant 0 : index
    %c0_24 = arith.constant 0 : index
    %c19 = arith.constant 19 : index
    %22 = vector.load %arg2[%c0_22, %c0_23, %c0_24, %c19] : memref<1x1x4x256xbf16, #tpu.memory_space<vmem>>, vector<1x1x4x182xbf16>
    %23 = vector.shape_cast %22 : vector<1x1x4x182xbf16> to vector<4x182xbf16>
    %cst_25 = arith.constant dense<0.000000e+00> : vector<8x182xf32>
    %24 = tpu.matmul %21, %23, %cst_25 {dimension_numbers = #tpu.dot_dimension_numbers<[1], [0], [0], [1], [0, 0, 1, 1], [], []>} : vector<8x4xbf16>, vector<4x182xbf16>, vector<8x182xf32> -> vector<8x182xf32>
    %25 = arith.addf %20, %24 : vector<8x182xf32>
    %c0_26 = arith.constant 0 : index
    %c20 = arith.constant 20 : index
    %26 = vector.load %arg4[%c0_26, %c20] : memref<8x36xbf16, #tpu.memory_space<vmem>>, vector<8x4xbf16>
    %c0_27 = arith.constant 0 : index
    %c0_28 = arith.constant 0 : index
    %c0_29 = arith.constant 0 : index
    %c20_30 = arith.constant 20 : index
    %27 = vector.load %arg2[%c0_27, %c0_28, %c0_29, %c20_30] : memref<1x1x4x256xbf16, #tpu.memory_space<vmem>>, vector<1x1x4x182xbf16>
    %28 = vector.shape_cast %27 : vector<1x1x4x182xbf16> to vector<4x182xbf16>
    %cst_31 = arith.constant dense<0.000000e+00> : vector<8x182xf32>
    %29 = tpu.matmul %26, %28, %cst_31 {dimension_numbers = #tpu.dot_dimension_numbers<[1], [0], [0], [1], [0, 0, 1, 1], [], []>} : vector<8x4xbf16>, vector<4x182xbf16>, vector<8x182xf32> -> vector<8x182xf32>
    %30 = arith.addf %25, %29 : vector<8x182xf32>
    %c0_32 = arith.constant 0 : index
    %c24 = arith.constant 24 : index
    %31 = vector.load %arg4[%c0_32, %c24] : memref<8x36xbf16, #tpu.memory_space<vmem>>, vector<8x4xbf16>
    %c0_33 = arith.constant 0 : index
    %c0_34 = arith.constant 0 : index
    %c0_35 = arith.constant 0 : index
    %c36 = arith.constant 36 : index
    %32 = vector.load %arg2[%c0_33, %c0_34, %c0_35, %c36] : memref<1x1x4x256xbf16, #tpu.memory_space<vmem>>, vector<1x1x4x182xbf16>
    %33 = vector.shape_cast %32 : vector<1x1x4x182xbf16> to vector<4x182xbf16>
    %cst_36 = arith.constant dense<0.000000e+00> : vector<8x182xf32>
    %34 = tpu.matmul %31, %33, %cst_36 {dimension_numbers = #tpu.dot_dimension_numbers<[1], [0], [0], [1], [0, 0, 1, 1], [], []>} : vector<8x4xbf16>, vector<4x182xbf16>, vector<8x182xf32> -> vector<8x182xf32>
    %35 = arith.addf %30, %34 : vector<8x182xf32>
    %c0_37 = arith.constant 0 : index
    %c28 = arith.constant 28 : index
    %36 = vector.load %arg4[%c0_37, %c28] : memref<8x36xbf16, #tpu.memory_space<vmem>>, vector<8x4xbf16>
    %c0_38 = arith.constant 0 : index
    %c0_39 = arith.constant 0 : index
    %c0_40 = arith.constant 0 : index
    %c37 = arith.constant 37 : index
    %37 = vector.load %arg2[%c0_38, %c0_39, %c0_40, %c37] : memref<1x1x4x256xbf16, #tpu.memory_space<vmem>>, vector<1x1x4x182xbf16>
    %38 = vector.shape_cast %37 : vector<1x1x4x182xbf16> to vector<4x182xbf16>
    %cst_41 = arith.constant dense<0.000000e+00> : vector<8x182xf32>
    %39 = tpu.matmul %36, %38, %cst_41 {dimension_numbers = #tpu.dot_dimension_numbers<[1], [0], [0], [1], [0, 0, 1, 1], [], []>} : vector<8x4xbf16>, vector<4x182xbf16>, vector<8x182xf32> -> vector<8x182xf32>
    %40 = arith.addf %35, %39 : vector<8x182xf32>
    %c0_42 = arith.constant 0 : index
    %c32 = arith.constant 32 : index
    %41 = vector.load %arg4[%c0_42, %c32] : memref<8x36xbf16, #tpu.memory_space<vmem>>, vector<8x4xbf16>
    %c0_43 = arith.constant 0 : index
    %c0_44 = arith.constant 0 : index
    %c0_45 = arith.constant 0 : index
    %c38 = arith.constant 38 : index
    %42 = vector.load %arg2[%c0_43, %c0_44, %c0_45, %c38] : memref<1x1x4x256xbf16, #tpu.memory_space<vmem>>, vector<1x1x4x182xbf16>
    %43 = vector.shape_cast %42 : vector<1x1x4x182xbf16> to vector<4x182xbf16>
    %cst_46 = arith.constant dense<0.000000e+00> : vector<8x182xf32>
    %44 = tpu.matmul %41, %43, %cst_46 {dimension_numbers = #tpu.dot_dimension_numbers<[1], [0], [0], [1], [0, 0, 1, 1], [], []>} : vector<8x4xbf16>, vector<4x182xbf16>, vector<8x182xf32> -> vector<8x182xf32>
    %45 = arith.addf %40, %44 : vector<8x182xf32>
    %c0_47 = arith.constant 0 : index
    %c0_48 = arith.constant 0 : index
    %46 = vector.load %arg5[%c0_47, %c0_48] : memref<8x1xf32, #tpu.memory_space<vmem>>, vector<8x1xf32>
    %47 = vector.broadcast %46 : vector<8x1xf32> to vector<8x182xf32>
    %48 = arith.addf %45, %47 : vector<8x182xf32>
    %cst_49 = arith.constant 0.000000e+00 : f32
    %49 = vector.broadcast %cst_49 : f32 to vector<8x182xf32>
    %50 = arith.maximumf %48, %49 : vector<8x182xf32>
    %c0_50 = arith.constant 0 : index
    %c0_51 = arith.constant 0 : index
    %c0_52 = arith.constant 0 : index
    %51 = vector.load %arg3[%c0_50, %c0_51, %c0_52] : memref<1x1x182xf32, #tpu.memory_space<vmem>>, vector<1x1x182xf32>
    %52 = vector.shape_cast %51 : vector<1x1x182xf32> to vector<1x182xf32>
    %53 = vector.broadcast %52 : vector<1x182xf32> to vector<8x182xf32>
    %54 = arith.mulf %50, %53 : vector<8x182xf32>
    %55 = arith.truncf %54 : vector<8x182xf32> to vector<8x182xbf16>
    %c0_53 = arith.constant 0 : index
    %c0_54 = arith.constant 0 : index
    %c0_55 = arith.constant 0 : index
    %56 = vector.load %arg6[%c0_53, %c0_54, %c0_55] : memref<4x4x32xbf16, #tpu.memory_space<vmem>>, vector<1x4x32xbf16>
    %57 = vector.shape_cast %56 : vector<1x4x32xbf16> to vector<4x32xbf16>
    %cst_56 = arith.constant 0.000000e+00 : f32
    %58 = vector.broadcast %cst_56 : f32 to vector<4x144xf32>
    %59 = vector.extract_strided_slice %57 {offsets = [0, 0], sizes = [4, 8], strides = [1, 1]} : vector<4x32xbf16> to vector<4x8xbf16>
    %60 = vector.extract_strided_slice %55 {offsets = [0, 0], sizes = [8, 144], strides = [1, 1]} : vector<8x182xbf16> to vector<8x144xbf16>
    %cst_57 = arith.constant dense<0.000000e+00> : vector<4x144xf32>
    %61 = tpu.matmul %59, %60, %cst_57 {dimension_numbers = #tpu.dot_dimension_numbers<[1], [0], [0], [1], [0, 0, 1, 1], [], []>} : vector<4x8xbf16>, vector<8x144xbf16>, vector<4x144xf32> -> vector<4x144xf32>
    %62 = arith.addf %58, %61 : vector<4x144xf32>
    %63 = vector.extract_strided_slice %57 {offsets = [0, 8], sizes = [4, 8], strides = [1, 1]} : vector<4x32xbf16> to vector<4x8xbf16>
    %64 = vector.extract_strided_slice %55 {offsets = [0, 1], sizes = [8, 144], strides = [1, 1]} : vector<8x182xbf16> to vector<8x144xbf16>
    %cst_58 = arith.constant dense<0.000000e+00> : vector<4x144xf32>
    %65 = tpu.matmul %63, %64, %cst_58 {dimension_numbers = #tpu.dot_dimension_numbers<[1], [0], [0], [1], [0, 0, 1, 1], [], []>} : vector<4x8xbf16>, vector<8x144xbf16>, vector<4x144xf32> -> vector<4x144xf32>
    %66 = arith.addf %62, %65 : vector<4x144xf32>
    %67 = vector.extract_strided_slice %57 {offsets = [0, 16], sizes = [4, 8], strides = [1, 1]} : vector<4x32xbf16> to vector<4x8xbf16>
    %68 = vector.extract_strided_slice %55 {offsets = [0, 18], sizes = [8, 144], strides = [1, 1]} : vector<8x182xbf16> to vector<8x144xbf16>
    %cst_59 = arith.constant dense<0.000000e+00> : vector<4x144xf32>
    %69 = tpu.matmul %67, %68, %cst_59 {dimension_numbers = #tpu.dot_dimension_numbers<[1], [0], [0], [1], [0, 0, 1, 1], [], []>} : vector<4x8xbf16>, vector<8x144xbf16>, vector<4x144xf32> -> vector<4x144xf32>
    %70 = arith.addf %66, %69 : vector<4x144xf32>
    %71 = vector.extract_strided_slice %57 {offsets = [0, 24], sizes = [4, 8], strides = [1, 1]} : vector<4x32xbf16> to vector<4x8xbf16>
    %72 = vector.extract_strided_slice %55 {offsets = [0, 19], sizes = [8, 144], strides = [1, 1]} : vector<8x182xbf16> to vector<8x144xbf16>
    %cst_60 = arith.constant dense<0.000000e+00> : vector<4x144xf32>
    %73 = tpu.matmul %71, %72, %cst_60 {dimension_numbers = #tpu.dot_dimension_numbers<[1], [0], [0], [1], [0, 0, 1, 1], [], []>} : vector<4x8xbf16>, vector<8x144xbf16>, vector<4x144xf32> -> vector<4x144xf32>
    %74 = arith.addf %70, %73 : vector<4x144xf32>
    %c0_61 = arith.constant 0 : index
    %c0_62 = arith.constant 0 : index
    %75 = vector.load %arg7[%c0_61, %c0_62] : memref<4x1xf32, #tpu.memory_space<vmem>>, vector<4x1xf32>
    %76 = vector.broadcast %75 : vector<4x1xf32> to vector<4x144xf32>
    %77 = arith.addf %74, %76 : vector<4x144xf32>
    %cst_63 = arith.constant 0.000000e+00 : f32
    %78 = vector.broadcast %cst_63 : f32 to vector<4x144xf32>
    %79 = arith.maximumf %77, %78 : vector<4x144xf32>
    %c0_64 = arith.constant 0 : index
    %c0_65 = arith.constant 0 : index
    %c0_66 = arith.constant 0 : index
    %c0_67 = arith.constant 0 : index
    %c0_68 = arith.constant 0 : index
    %80 = vector.load %arg8[%c0_64, %c0_65, %c0_66, %c0_67, %c0_68] : memref<1x1x4x4x144xf32, #tpu.memory_space<vmem>>, vector<1x1x1x4x144xf32>
    %81 = vector.shape_cast %80 : vector<1x1x1x4x144xf32> to vector<4x144xf32>
    %82 = vector.shape_cast %79 : vector<4x144xf32> to vector<1x1x1x4x144xf32>
    tpu.vector_store %arg8[%c0_64, %c0_65, %c0_66, %c0_67, %c0_68], %82 {strides = array<i32>} : memref<1x1x4x4x144xf32, #tpu.memory_space<vmem>>, vector<1x1x1x4x144xf32>,
    %c1_69 = arith.constant 1 : index
    %c0_70 = arith.constant 0 : index
    %c0_71 = arith.constant 0 : index
    %83 = vector.load %arg6[%c1_69, %c0_70, %c0_71] : memref<4x4x32xbf16, #tpu.memory_space<vmem>>, vector<1x4x32xbf16>
    %84 = vector.shape_cast %83 : vector<1x4x32xbf16> to vector<4x32xbf16>
    %cst_72 = arith.constant 0.000000e+00 : f32
    %85 = vector.broadcast %cst_72 : f32 to vector<4x144xf32>
    %86 = vector.extract_strided_slice %84 {offsets = [0, 0], sizes = [4, 8], strides = [1, 1]} : vector<4x32xbf16> to vector<4x8xbf16>
    %87 = vector.extract_strided_slice %55 {offsets = [0, 1], sizes = [8, 144], strides = [1, 1]} : vector<8x182xbf16> to vector<8x144xbf16>
    %cst_73 = arith.constant dense<0.000000e+00> : vector<4x144xf32>
    %88 = tpu.matmul %86, %87, %cst_73 {dimension_numbers = #tpu.dot_dimension_numbers<[1], [0], [0], [1], [0, 0, 1, 1], [], []>} : vector<4x8xbf16>, vector<8x144xbf16>, vector<4x144xf32> -> vector<4x144xf32>
    %89 = arith.addf %85, %88 : vector<4x144xf32>
    %90 = vector.extract_strided_slice %84 {offsets = [0, 8], sizes = [4, 8], strides = [1, 1]} : vector<4x32xbf16> to vector<4x8xbf16>
    %91 = vector.extract_strided_slice %55 {offsets = [0, 2], sizes = [8, 144], strides = [1, 1]} : vector<8x182xbf16> to vector<8x144xbf16>
    %cst_74 = arith.constant dense<0.000000e+00> : vector<4x144xf32>
    %92 = tpu.matmul %90, %91, %cst_74 {dimension_numbers = #tpu.dot_dimension_numbers<[1], [0], [0], [1], [0, 0, 1, 1], [], []>} : vector<4x8xbf16>, vector<8x144xbf16>, vector<4x144xf32> -> vector<4x144xf32>
    %93 = arith.addf %89, %92 : vector<4x144xf32>
    %94 = vector.extract_strided_slice %84 {offsets = [0, 16], sizes = [4, 8], strides = [1, 1]} : vector<4x32xbf16> to vector<4x8xbf16>
    %95 = vector.extract_strided_slice %55 {offsets = [0, 19], sizes = [8, 144], strides = [1, 1]} : vector<8x182xbf16> to vector<8x144xbf16>
    %cst_75 = arith.constant dense<0.000000e+00> : vector<4x144xf32>
    %96 = tpu.matmul %94, %95, %cst_75 {dimension_numbers = #tpu.dot_dimension_numbers<[1], [0], [0], [1], [0, 0, 1, 1], [], []>} : vector<4x8xbf16>, vector<8x144xbf16>, vector<4x144xf32> -> vector<4x144xf32>
    %97 = arith.addf %93, %96 : vector<4x144xf32>
    %98 = vector.extract_strided_slice %84 {offsets = [0, 24], sizes = [4, 8], strides = [1, 1]} : vector<4x32xbf16> to vector<4x8xbf16>
    %99 = vector.extract_strided_slice %55 {offsets = [0, 20], sizes = [8, 144], strides = [1, 1]} : vector<8x182xbf16> to vector<8x144xbf16>
    %cst_76 = arith.constant dense<0.000000e+00> : vector<4x144xf32>
    %100 = tpu.matmul %98, %99, %cst_76 {dimension_numbers = #tpu.dot_dimension_numbers<[1], [0], [0], [1], [0, 0, 1, 1], [], []>} : vector<4x8xbf16>, vector<8x144xbf16>, vector<4x144xf32> -> vector<4x144xf32>
    %101 = arith.addf %97, %100 : vector<4x144xf32>
    %c0_77 = arith.constant 0 : index
    %c0_78 = arith.constant 0 : index
    %102 = vector.load %arg7[%c0_77, %c0_78] : memref<4x1xf32, #tpu.memory_space<vmem>>, vector<4x1xf32>
    %103 = vector.broadcast %102 : vector<4x1xf32> to vector<4x144xf32>
    %104 = arith.addf %101, %103 : vector<4x144xf32>
    %cst_79 = arith.constant 0.000000e+00 : f32
    %105 = vector.broadcast %cst_79 : f32 to vector<4x144xf32>
    %106 = arith.maximumf %104, %105 : vector<4x144xf32>
    %c0_80 = arith.constant 0 : index
    %c0_81 = arith.constant 0 : index
    %c1_82 = arith.constant 1 : index
    %c0_83 = arith.constant 0 : index
    %c0_84 = arith.constant 0 : index
    %107 = vector.load %arg8[%c0_80, %c0_81, %c1_82, %c0_83, %c0_84] : memref<1x1x4x4x144xf32, #tpu.memory_space<vmem>>, vector<1x1x1x4x144xf32>
    %108 = vector.shape_cast %107 : vector<1x1x1x4x144xf32> to vector<4x144xf32>
    %109 = vector.shape_cast %106 : vector<4x144xf32> to vector<1x1x1x4x144xf32>
    tpu.vector_store %arg8[%c0_80, %c0_81, %c1_82, %c0_83, %c0_84], %109 {strides = array<i32>} : memref<1x1x4x4x144xf32, #tpu.memory_space<vmem>>, vector<1x1x1x4x144xf32>,
    %c2_85 = arith.constant 2 : index
    %c0_86 = arith.constant 0 : index
    %c0_87 = arith.constant 0 : index
    %110 = vector.load %arg6[%c2_85, %c0_86, %c0_87] : memref<4x4x32xbf16, #tpu.memory_space<vmem>>, vector<1x4x32xbf16>
    %111 = vector.shape_cast %110 : vector<1x4x32xbf16> to vector<4x32xbf16>
    %cst_88 = arith.constant 0.000000e+00 : f32
    %112 = vector.broadcast %cst_88 : f32 to vector<4x144xf32>
    %113 = vector.extract_strided_slice %111 {offsets = [0, 0], sizes = [4, 8], strides = [1, 1]} : vector<4x32xbf16> to vector<4x8xbf16>
    %114 = vector.extract_strided_slice %55 {offsets = [0, 18], sizes = [8, 144], strides = [1, 1]} : vector<8x182xbf16> to vector<8x144xbf16>
    %cst_89 = arith.constant dense<0.000000e+00> : vector<4x144xf32>
    %115 = tpu.matmul %113, %114, %cst_89 {dimension_numbers = #tpu.dot_dimension_numbers<[1], [0], [0], [1], [0, 0, 1, 1], [], []>} : vector<4x8xbf16>, vector<8x144xbf16>, vector<4x144xf32> -> vector<4x144xf32>
    %116 = arith.addf %112, %115 : vector<4x144xf32>
    %117 = vector.extract_strided_slice %111 {offsets = [0, 8], sizes = [4, 8], strides = [1, 1]} : vector<4x32xbf16> to vector<4x8xbf16>
    %118 = vector.extract_strided_slice %55 {offsets = [0, 19], sizes = [8, 144], strides = [1, 1]} : vector<8x182xbf16> to vector<8x144xbf16>
    %cst_90 = arith.constant dense<0.000000e+00> : vector<4x144xf32>
    %119 = tpu.matmul %117, %118, %cst_90 {dimension_numbers = #tpu.dot_dimension_numbers<[1], [0], [0], [1], [0, 0, 1, 1], [], []>} : vector<4x8xbf16>, vector<8x144xbf16>, vector<4x144xf32> -> vector<4x144xf32>
    %120 = arith.addf %116, %119 : vector<4x144xf32>
    %121 = vector.extract_strided_slice %111 {offsets = [0, 16], sizes = [4, 8], strides = [1, 1]} : vector<4x32xbf16> to vector<4x8xbf16>
    %122 = vector.extract_strided_slice %55 {offsets = [0, 36], sizes = [8, 144], strides = [1, 1]} : vector<8x182xbf16> to vector<8x144xbf16>
    %cst_91 = arith.constant dense<0.000000e+00> : vector<4x144xf32>
    %123 = tpu.matmul %121, %122, %cst_91 {dimension_numbers = #tpu.dot_dimension_numbers<[1], [0], [0], [1], [0, 0, 1, 1], [], []>} : vector<4x8xbf16>, vector<8x144xbf16>, vector<4x144xf32> -> vector<4x144xf32>
    %124 = arith.addf %120, %123 : vector<4x144xf32>
    %125 = vector.extract_strided_slice %111 {offsets = [0, 24], sizes = [4, 8], strides = [1, 1]} : vector<4x32xbf16> to vector<4x8xbf16>
    %126 = vector.extract_strided_slice %55 {offsets = [0, 37], sizes = [8, 144], strides = [1, 1]} : vector<8x182xbf16> to vector<8x144xbf16>
    %cst_92 = arith.constant dense<0.000000e+00> : vector<4x144xf32>
    %127 = tpu.matmul %125, %126, %cst_92 {dimension_numbers = #tpu.dot_dimension_numbers<[1], [0], [0], [1], [0, 0, 1, 1], [], []>} : vector<4x8xbf16>, vector<8x144xbf16>, vector<4x144xf32> -> vector<4x144xf32>
    %128 = arith.addf %124, %127 : vector<4x144xf32>
    %c0_93 = arith.constant 0 : index
    %c0_94 = arith.constant 0 : index
    %129 = vector.load %arg7[%c0_93, %c0_94] : memref<4x1xf32, #tpu.memory_space<vmem>>, vector<4x1xf32>
    %130 = vector.broadcast %129 : vector<4x1xf32> to vector<4x144xf32>
    %131 = arith.addf %128, %130 : vector<4x144xf32>
    %cst_95 = arith.constant 0.000000e+00 : f32
    %132 = vector.broadcast %cst_95 : f32 to vector<4x144xf32>
    %133 = arith.maximumf %131, %132 : vector<4x144xf32>
    %c0_96 = arith.constant 0 : index
    %c0_97 = arith.constant 0 : index
    %c2_98 = arith.constant 2 : index
    %c0_99 = arith.constant 0 : index
    %c0_100 = arith.constant 0 : index
    %134 = vector.load %arg8[%c0_96, %c0_97, %c2_98, %c0_99, %c0_100] : memref<1x1x4x4x144xf32, #tpu.memory_space<vmem>>, vector<1x1x1x4x144xf32>
    %135 = vector.shape_cast %134 : vector<1x1x1x4x144xf32> to vector<4x144xf32>
    %136 = vector.shape_cast %133 : vector<4x144xf32> to vector<1x1x1x4x144xf32>
    tpu.vector_store %arg8[%c0_96, %c0_97, %c2_98, %c0_99, %c0_100], %136 {strides = array<i32>} : memref<1x1x4x4x144xf32, #tpu.memory_space<vmem>>, vector<1x1x1x4x144xf32>,
    %c3 = arith.constant 3 : index
    %c0_101 = arith.constant 0 : index
    %c0_102 = arith.constant 0 : index
    %137 = vector.load %arg6[%c3, %c0_101, %c0_102] : memref<4x4x32xbf16, #tpu.memory_space<vmem>>, vector<1x4x32xbf16>
    %138 = vector.shape_cast %137 : vector<1x4x32xbf16> to vector<4x32xbf16>
    %cst_103 = arith.constant 0.000000e+00 : f32
    %139 = vector.broadcast %cst_103 : f32 to vector<4x144xf32>
    %140 = vector.extract_strided_slice %138 {offsets = [0, 0], sizes = [4, 8], strides = [1, 1]} : vector<4x32xbf16> to vector<4x8xbf16>
    %141 = vector.extract_strided_slice %55 {offsets = [0, 19], sizes = [8, 144], strides = [1, 1]} : vector<8x182xbf16> to vector<8x144xbf16>
    %cst_104 = arith.constant dense<0.000000e+00> : vector<4x144xf32>
    %142 = tpu.matmul %140, %141, %cst_104 {dimension_numbers = #tpu.dot_dimension_numbers<[1], [0], [0], [1], [0, 0, 1, 1], [], []>} : vector<4x8xbf16>, vector<8x144xbf16>, vector<4x144xf32> -> vector<4x144xf32>
    %143 = arith.addf %139, %142 : vector<4x144xf32>
    %144 = vector.extract_strided_slice %138 {offsets = [0, 8], sizes = [4, 8], strides = [1, 1]} : vector<4x32xbf16> to vector<4x8xbf16>
    %145 = vector.extract_strided_slice %55 {offsets = [0, 20], sizes = [8, 144], strides = [1, 1]} : vector<8x182xbf16> to vector<8x144xbf16>
    %cst_105 = arith.constant dense<0.000000e+00> : vector<4x144xf32>
    %146 = tpu.matmul %144, %145, %cst_105 {dimension_numbers = #tpu.dot_dimension_numbers<[1], [0], [0], [1], [0, 0, 1, 1], [], []>} : vector<4x8xbf16>, vector<8x144xbf16>, vector<4x144xf32> -> vector<4x144xf32>
    %147 = arith.addf %143, %146 : vector<4x144xf32>
    %148 = vector.extract_strided_slice %138 {offsets = [0, 16], sizes = [4, 8], strides = [1, 1]} : vector<4x32xbf16> to vector<4x8xbf16>
    %149 = vector.extract_strided_slice %55 {offsets = [0, 37], sizes = [8, 144], strides = [1, 1]} : vector<8x182xbf16> to vector<8x144xbf16>
    %cst_106 = arith.constant dense<0.000000e+00> : vector<4x144xf32>
    %150 = tpu.matmul %148, %149, %cst_106 {dimension_numbers = #tpu.dot_dimension_numbers<[1], [0], [0], [1], [0, 0, 1, 1], [], []>} : vector<4x8xbf16>, vector<8x144xbf16>, vector<4x144xf32> -> vector<4x144xf32>
    %151 = arith.addf %147, %150 : vector<4x144xf32>
    %152 = vector.extract_strided_slice %138 {offsets = [0, 24], sizes = [4, 8], strides = [1, 1]} : vector<4x32xbf16> to vector<4x8xbf16>
    %153 = vector.extract_strided_slice %55 {offsets = [0, 38], sizes = [8, 144], strides = [1, 1]} : vector<8x182xbf16> to vector<8x144xbf16>
    %cst_107 = arith.constant dense<0.000000e+00> : vector<4x144xf32>
    %154 = tpu.matmul %152, %153, %cst_107 {dimension_numbers = #tpu.dot_dimension_numbers<[1], [0], [0], [1], [0, 0, 1, 1], [], []>} : vector<4x8xbf16>, vector<8x144xbf16>, vector<4x144xf32> -> vector<4x144xf32>
    %155 = arith.addf %151, %154 : vector<4x144xf32>
    %c0_108 = arith.constant 0 : index
    %c0_109 = arith.constant 0 : index
    %156 = vector.load %arg7[%c0_108, %c0_109] : memref<4x1xf32, #tpu.memory_space<vmem>>, vector<4x1xf32>
    %157 = vector.broadcast %156 : vector<4x1xf32> to vector<4x144xf32>
    %158 = arith.addf %155, %157 : vector<4x144xf32>
    %cst_110 = arith.constant 0.000000e+00 : f32
    %159 = vector.broadcast %cst_110 : f32 to vector<4x144xf32>
    %160 = arith.maximumf %158, %159 : vector<4x144xf32>
    %c0_111 = arith.constant 0 : index
    %c0_112 = arith.constant 0 : index
    %c3_113 = arith.constant 3 : index
    %c0_114 = arith.constant 0 : index
    %c0_115 = arith.constant 0 : index
    %161 = vector.load %arg8[%c0_111, %c0_112, %c3_113, %c0_114, %c0_115] : memref<1x1x4x4x144xf32, #tpu.memory_space<vmem>>, vector<1x1x1x4x144xf32>
    %162 = vector.shape_cast %161 : vector<1x1x1x4x144xf32> to vector<4x144xf32>
    %163 = vector.shape_cast %160 : vector<4x144xf32> to vector<1x1x1x4x144xf32>
    tpu.vector_store %arg8[%c0_111, %c0_112, %c3_113, %c0_114, %c0_115], %163 {strides = array<i32>} : memref<1x1x4x4x144xf32, #tpu.memory_space<vmem>>, vector<1x1x1x4x144xf32>,
    return
  }
  func.func @transform_0(%arg0: i32, %arg1: i32) -> (i32, i32, i32, i32) {
    %c0_i32 = arith.constant 0 : i32
    %c0_i32_0 = arith.constant 0 : i32
    %c0_i32_1 = arith.constant 0 : i32
    return %arg0, %arg1, %c0_i32, %c0_i32_0 : i32, i32, i32, i32
  }
  func.func @transform_1(%arg0: i32, %arg1: i32) -> (i32, i32, i32) {
    %c0_i32 = arith.constant 0 : i32
    %c0_i32_0 = arith.constant 0 : i32
    %c0_i32_1 = arith.constant 0 : i32
    return %arg1, %c0_i32, %c0_i32_0 : i32, i32, i32
  }
  func.func @transform_2(%arg0: i32, %arg1: i32) -> (i32, i32) {
    %c0_i32 = arith.constant 0 : i32
    %c0_i32_0 = arith.constant 0 : i32
    %c0_i32_1 = arith.constant 0 : i32
    return %c0_i32, %c0_i32_0 : i32, i32
  }
  func.func @transform_3(%arg0: i32, %arg1: i32) -> (i32, i32) {
    %c0_i32 = arith.constant 0 : i32
    %c0_i32_0 = arith.constant 0 : i32
    %c0_i32_1 = arith.constant 0 : i32
    return %c0_i32, %c0_i32_0 : i32, i32
  }
  func.func @transform_4(%arg0: i32, %arg1: i32) -> (i32, i32, i32) {
    %c0_i32 = arith.constant 0 : i32
    %c0_i32_0 = arith.constant 0 : i32
    %c0_i32_1 = arith.constant 0 : i32
    %c0_i32_2 = arith.constant 0 : i32
    return %c0_i32, %c0_i32_0, %c0_i32_1 : i32, i32, i32
  }
  func.func @transform_5(%arg0: i32, %arg1: i32) -> (i32, i32) {
    %c0_i32 = arith.constant 0 : i32
    %c0_i32_0 = arith.constant 0 : i32
    %c0_i32_1 = arith.constant 0 : i32
    return %c0_i32, %c0_i32_0 : i32, i32
  }
  func.func @transform_6(%arg0: i32, %arg1: i32) -> (i32, i32, i32, i32, i32) {
    %c0_i32 = arith.constant 0 : i32
    %c0_i32_0 = arith.constant 0 : i32
    %c0_i32_1 = arith.constant 0 : i32
    %c0_i32_2 = arith.constant 0 : i32
    return %arg0, %arg1, %c0_i32, %c0_i32_0, %c0_i32_1 : i32, i32, i32, i32, i32
  }
}

</mosaic_0001>

<llo_original>
// kernel: decoder_block_forward.1
$region0: #{decoder_block_forward.1}
  #allocation0 [shape = 'u32[]', space=smem, size = 0x4, offset = 0x4, fixed_abs, tag = 'smem constant byte address 0x4 - core index']
  #allocation1 [shape = 'u32[144,128]{1,0:T(1,128)}', space=vmem, size = 0x12000, scoped, tag = 'internal scratch']
  %s0 = inlined_call_operand.vmem [shape: bf16[2,2,4,256], index: 0, kind: input, shape index: {}]
  %s1 = inlined_call_operand.vmem [shape: f32[2,1,182], index: 1, kind: input, shape index: {}]
  %s2 = inlined_call_operand.vmem [shape: bf16[8,36], index: 2, kind: input, shape index: {}]
  %s3 = inlined_call_operand.vmem [shape: f32[8,1], index: 3, kind: input, shape index: {}]
  %s4 = inlined_call_operand.vmem [shape: bf16[4,4,32], index: 4, kind: input, shape index: {}]
  %s5 = inlined_call_operand.vmem [shape: f32[4,1], index: 5, kind: input, shape index: {}]
  %s6 = inlined_call_operand.vmem [shape: f32[2,2,4,4,144], index: 6, kind: output, shape index: {}]
  %s7 = sld [smem:[#allocation0]]
  $region57: #{decoder_block_forward.1} parent=0
    _
  %s9 = ssub.s32 1, %s7
  %s10 = scalar_select 0, %s9, %s7
  loop: start=0, step=1, limit=6
  $region2: #{decoder_block_forward.1} parent=0 // loop_pre_header
    _
  $region3: #{decoder_block_forward.1} parent=0 // loop_header
    %s12 = sphi 0, %s16
    %p13 = scmp.ge.s32.totalorder %s12, 6
    %s19 = sphi 0, %s31
    %s20 = sphi 0, %s27
    %s21 = sphi 0, %s19
    %s22 = sphi 0, %s20
    %s23 = sphi 0, %s21
    %s24 = sphi 0, %s22
    %s36 = sphi 0, %s38
    %s39 = sphi 0, %s36
    %s40 = sphi 0, %s39
    %s56 = sphi 0, %s40
    %s62 = sphi 0, %s64
    %s65 = sphi 0, %s62
    %s66 = sphi 0, %s65
    %s82 = sphi 0, %s66
    %s86 = sphi 0, %s86
    %s88 = sphi 0, %s86
    %s89 = sphi 0, %s88
    %s103 = sphi 0, %s89
    %s107 = sphi 0, %s107
    %s109 = sphi 0, %s107
    %s110 = sphi 0, %s109
    %s124 = sphi 0, %s110
    %s128 = sphi 0, %s128
    %s130 = sphi 0, %s128
    %s131 = sphi 0, %s130
    %s145 = sphi 0, %s131
    %s149 = sphi 0, %s149
    %s151 = sphi 0, %s149
    %s152 = sphi 0, %s151
    %s166 = sphi 0, %s152
    %s174 = sphi 0, %s176
    %s177 = sphi 0, %s174
    %s178 = sphi 0, %s177
    %s194 = sphi 0, %s178
  $region4: #{decoder_block_forward.1} parent=0 // loop_header_branch
    %15 = sbr.rel (%p13) target = $region8
  $region5: #{decoder_block_forward.1} parent=0 // loop_body
    %s17 = ssub.s32 %s12, 1
    %s18 = ssub.s32 %s12, 2
    %s25 = sadd.s32 1, %s20
    %p26 = scmp.ge.s32.totalorder %s25, 2
    %s27 = scalar_select %p26, 0, %s25
    %s28 = sadd.s32 1, %s19
    %s29 = scalar_select %p26, %s28, %s19
    %p30 = scmp.ge.s32.totalorder %s29, 2
    %s31 = scalar_select %p30, 0, %s29
    %s32 = ssub.s32 %s19, %s31
    %s33 = ssub.s32 %s20, %s27
    %s34 = sor.u32 %s32, %s33
    %p35 = scmp.eq.s32.totalorder %s34, 0
    %s37 = sadd.s32 %s36, 1
    %s38 = scalar_select %p35, %s36, %s37
    %p41 = pneg %p35
    %p42 = scmp.eq.s32.totalorder %s12, 3
    %p43 = por %p41, %p42
    %p44 = scmp.ne.s32.totalorder %s36, %s39
    %p45 = scmp.eq.s32.totalorder %s12, 0
    %p46 = por %p44, %p45
    %p47 = scmp.ne.s32.totalorder %s36, %s39
    %p48 = scmp.eq.s32.totalorder %s17, 3
    %p49 = por %p47, %p48
    %p50 = scmp.ne.s32.totalorder %s39, %s40
    %p51 = scmp.eq.s32.totalorder %s17, 0
    %p52 = por %p50, %p51
    %p53 = scmp.ne.s32.totalorder %s39, %s40
    %p54 = scmp.eq.s32.totalorder %s18, 3
    %p55 = por %p53, %p54
    %p57 = scmp.ne.s32.totalorder %s40, %s56
    %p58 = scmp.eq.s32.totalorder %s18, 0
    %p59 = por %p57, %p58
    %s60 = ssub.s32 %s20, %s27
    %p61 = scmp.eq.s32.totalorder %s60, 0
    %s63 = sadd.s32 %s62, 1
    %s64 = scalar_select %p61, %s62, %s63
    %p67 = pneg %p61
    %p68 = scmp.eq.s32.totalorder %s12, 3
    %p69 = por %p67, %p68
    %p70 = scmp.ne.s32.totalorder %s62, %s65
    %p71 = scmp.eq.s32.totalorder %s12, 0
    %p72 = por %p70, %p71
    %p73 = scmp.ne.s32.totalorder %s62, %s65
    %p74 = scmp.eq.s32.totalorder %s17, 3
    %p75 = por %p73, %p74
    %p76 = scmp.ne.s32.totalorder %s65, %s66
    %p77 = scmp.eq.s32.totalorder %s17, 0
    %p78 = por %p76, %p77
    %p79 = scmp.ne.s32.totalorder %s65, %s66
    %p80 = scmp.eq.s32.totalorder %s18, 3
    %p81 = por %p79, %p80
    %p83 = scmp.ne.s32.totalorder %s66, %s82
    %p84 = scmp.eq.s32.totalorder %s18, 0
    %p85 = por %p83, %p84
    %s87 = sadd.s32 %s86, 1
    %p90 = scmp.eq.s32.totalorder %s12, 3
    %p91 = scmp.ne.s32.totalorder %s86, %s88
    %p92 = scmp.eq.s32.totalorder %s12, 0
    %p93 = por %p91, %p92
    %p94 = scmp.ne.s32.totalorder %s86, %s88
    %p95 = scmp.eq.s32.totalorder %s17, 3
    %p96 = por %p94, %p95
    %p97 = scmp.ne.s32.totalorder %s88, %s89
    %p98 = scmp.eq.s32.totalorder %s17, 0
    %p99 = por %p97, %p98
    %p100 = scmp.ne.s32.totalorder %s88, %s89
    %p101 = scmp.eq.s32.totalorder %s18, 3
    %p102 = por %p100, %p101
    %p104 = scmp.ne.s32.totalorder %s89, %s103
    %p105 = scmp.eq.s32.totalorder %s18, 0
    %p106 = por %p104, %p105
    %s108 = sadd.s32 %s107, 1
    %p111 = scmp.eq.s32.totalorder %s12, 3
    %p112 = scmp.ne.s32.totalorder %s107, %s109
    %p113 = scmp.eq.s32.totalorder %s12, 0
    %p114 = por %p112, %p113
    %p115 = scmp.ne.s32.totalorder %s107, %s109
    %p116 = scmp.eq.s32.totalorder %s17, 3
    %p117 = por %p115, %p116
    %p118 = scmp.ne.s32.totalorder %s109, %s110
    %p119 = scmp.eq.s32.totalorder %s17, 0
    %p120 = por %p118, %p119
    %p121 = scmp.ne.s32.totalorder %s109, %s110
    %p122 = scmp.eq.s32.totalorder %s18, 3
    %p123 = por %p121, %p122
    %p125 = scmp.ne.s32.totalorder %s110, %s124
    %p126 = scmp.eq.s32.totalorder %s18, 0
    %p127 = por %p125, %p126
    %s129 = sadd.s32 %s128, 1
    %p132 = scmp.eq.s32.totalorder %s12, 3
    %p133 = scmp.ne.s32.totalorder %s128, %s130
    %p134 = scmp.eq.s32.totalorder %s12, 0
    %p135 = por %p133, %p134
    %p136 = scmp.ne.s32.totalorder %s128, %s130
    %p137 = scmp.eq.s32.totalorder %s17, 3
    %p138 = por %p136, %p137
    %p139 = scmp.ne.s32.totalorder %s130, %s131
    %p140 = scmp.eq.s32.totalorder %s17, 0
    %p141 = por %p139, %p140
    %p142 = scmp.ne.s32.totalorder %s130, %s131
    %p143 = scmp.eq.s32.totalorder %s18, 3
    %p144 = por %p142, %p143
    %p146 = scmp.ne.s32.totalorder %s131, %s145
    %p147 = scmp.eq.s32.totalorder %s18, 0
    %p148 = por %p146, %p147
    %s150 = sadd.s32 %s149, 1
    %p153 = scmp.eq.s32.totalorder %s12, 3
    %p154 = scmp.ne.s32.totalorder %s149, %s151
    %p155 = scmp.eq.s32.totalorder %s12, 0
    %p156 = por %p154, %p155
    %p157 = scmp.ne.s32.totalorder %s149, %s151
    %p158 = scmp.eq.s32.totalorder %s17, 3
    %p159 = por %p157, %p158
    %p160 = scmp.ne.s32.totalorder %s151, %s152
    %p161 = scmp.eq.s32.totalorder %s17, 0
    %p162 = por %p160, %p161
    %p163 = scmp.ne.s32.totalorder %s151, %s152
    %p164 = scmp.eq.s32.totalorder %s18, 3
    %p165 = por %p163, %p164
    %p167 = scmp.ne.s32.totalorder %s152, %s166
    %p168 = scmp.eq.s32.totalorder %s18, 0
    %p169 = por %p167, %p168
    %s170 = ssub.s32 %s19, %s31
    %s171 = ssub.s32 %s20, %s27
    %s172 = sor.u32 %s170, %s171
    %p173 = scmp.eq.s32.totalorder %s172, 0
    %s175 = sadd.s32 %s174, 1
    %s176 = scalar_select %p173, %s174, %s175
    %p179 = pneg %p173
    %p180 = scmp.eq.s32.totalorder %s12, 3
    %p181 = por %p179, %p180
    %p182 = scmp.ne.s32.totalorder %s174, %s177
    %p183 = scmp.eq.s32.totalorder %s12, 0
    %p184 = por %p182, %p183
    %p185 = scmp.ne.s32.totalorder %s174, %s177
    %p186 = scmp.eq.s32.totalorder %s17, 3
    %p187 = por %p185, %p186
    %p188 = scmp.ne.s32.totalorder %s177, %s178
    %p189 = scmp.eq.s32.totalorder %s17, 0
    %p190 = por %p188, %p189
    %p191 = scmp.ne.s32.totalorder %s177, %s178
    %p192 = scmp.eq.s32.totalorder %s18, 3
    %p193 = por %p191, %p192
    %p195 = scmp.ne.s32.totalorder %s178, %s194
    %p196 = scmp.eq.s32.totalorder %s18, 0
    %p197 = por %p195, %p196
    %p198 = scmp.le.s32.totalorder 1, %s12
    %p199 = scmp.lt.s32.totalorder %s12, 5
    %p200 = pnand %p198, %p199
    %p201 = pneg %p200
    // Predicated region
    $region9: #{decoder_block_forward.1} parent=5 // pred_check
      _
    $region10: #{decoder_block_forward.1} parent=5 // pred_check_branch
      %203 = sbr.rel (%p200) target = $region12
    $region11: #{decoder_block_forward.1} parent=5 // pred_region
      %s204 = ssub.s32 %s12, 1
      // Predicated region
      $region13: #{decoder_block_forward.1} parent=11 // pred_check
        %p205 = pneg %p99
      $region14: #{decoder_block_forward.1} parent=11 // pred_check_branch
        %207 = sbr.rel (%p205) target = $region16
      $region15: #{decoder_block_forward.1} parent=11 // pred_region
        _
      $region16: #{decoder_block_forward.1} parent=11 // pred_fallthru
        _
      // Predicated region
      $region17: #{decoder_block_forward.1} parent=11 // pred_check
        %p208 = pneg %p120
      $region18: #{decoder_block_forward.1} parent=11 // pred_check_branch
        %210 = sbr.rel (%p208) target = $region20
      $region19: #{decoder_block_forward.1} parent=11 // pred_region
        _
      $region20: #{decoder_block_forward.1} parent=11 // pred_fallthru
        _
      // Predicated region
      $region21: #{decoder_block_forward.1} parent=11 // pred_check
        %p211 = pneg %p141
      $region22: #{decoder_block_forward.1} parent=11 // pred_check_branch
        %213 = sbr.rel (%p211) target = $region24
      $region23: #{decoder_block_forward.1} parent=11 // pred_region
        _
      $region24: #{decoder_block_forward.1} parent=11 // pred_fallthru
        _
      // Predicated region
      $region25: #{decoder_block_forward.1} parent=11 // pred_check
        %p214 = pneg %p162
      $region26: #{decoder_block_forward.1} parent=11 // pred_check_branch
        %216 = sbr.rel (%p214) target = $region28
      $region27: #{decoder_block_forward.1} parent=11 // pred_region
        _
      $region28: #{decoder_block_forward.1} parent=11 // pred_fallthru
        _
    $region12: #{decoder_block_forward.1} parent=5 // pred_fallthru
      _
    %p217 = scmp.lt.s32.totalorder %s12, 4
    // Predicated region
    $region29: #{decoder_block_forward.1} parent=5 // pred_check
      %p218 = pneg %p217
    $region30: #{decoder_block_forward.1} parent=5 // pred_check_branch
      %220 = sbr.rel (%p218) target = $region32
    $region31: #{decoder_block_forward.1} parent=5 // pred_region
      // Predicated region
      $region33: #{decoder_block_forward.1} parent=31 // pred_check
        %p221 = pneg %p46
      $region34: #{decoder_block_forward.1} parent=31 // pred_check_branch
        %223 = sbr.rel (%p221) target = $region36
      $region35: #{decoder_block_forward.1} parent=31 // pred_region
        %p224 = scmp.lt.s32.totalorder %s19, 1
        %s225 = scalar_select %p224, %s19, 1
        %p226 = scmp.lt.s32.totalorder %s20, 1
        %s227 = scalar_select %p226, %s20, 1
        %s228 = smul.addr %s227, 2
        %s229 = smul.addr %s225, 4
        %s230 = sadd.s32 %s228, %s229
        %s231 = smul.addr %s230, 2
        %s232 = scalar_lea.vmem %s0, %s231
      $region36: #{decoder_block_forward.1} parent=31 // pred_fallthru
        _
      // Predicated region
      $region37: #{decoder_block_forward.1} parent=31 // pred_check
        %p233 = pneg %p72
      $region38: #{decoder_block_forward.1} parent=31 // pred_check_branch
        %235 = sbr.rel (%p233) target = $region40
      $region39: #{decoder_block_forward.1} parent=31 // pred_region
        %p236 = scmp.lt.s32.totalorder %s20, 1
        %s237 = scalar_select %p236, %s20, 1
        %s238 = smul.addr %s237, 2
        %s239 = scalar_lea.vmem %s1, %s238
      $region40: #{decoder_block_forward.1} parent=31 // pred_fallthru
        _
    $region32: #{decoder_block_forward.1} parent=5 // pred_fallthru
      _
    %p240 = scmp.le.s32.totalorder 1, %s12
    %p241 = scmp.lt.s32.totalorder %s12, 5
    %p242 = pnand %p240, %p241
    %p243 = pneg %p242
    // Predicated region
    $region41: #{decoder_block_forward.1} parent=5 // pred_check
      _
    $region42: #{decoder_block_forward.1} parent=5 // pred_check_branch
      %245 = sbr.rel (%p242) target = $region44
    $region43: #{decoder_block_forward.1} parent=5 // pred_region
      %s246 = ssub.s32 %s12, 1
      %p247 = scmp.lt.s32.totalorder %s21, 1
      %s248 = scalar_select %p247, %s21, 1
      %p249 = scmp.lt.s32.totalorder %s22, 1
      %s250 = scalar_select %p249, %s22, 1
      %s251 = smul.addr %s250, 2
      %s252 = smul.addr %s248, 4
      %s253 = sadd.s32 %s251, %s252
      %s254 = smul.addr %s253, 2
      %s255 = scalar_lea.vmem %s0, %s254
      %p256 = pneg %p52
      %p257 = pneg %p49
      %p258 = scmp.lt.s32.totalorder %s22, 1
      %s259 = scalar_select %p258, %s22, 1
      %s260 = smul.addr %s259, 2
      %s261 = scalar_lea.vmem %s1, %s260
      %p262 = pneg %p78
      %p263 = pneg %p75
      %p264 = pneg %p99
      %p265 = pneg %p96
      %p266 = pneg %p120
      %p267 = pneg %p117
      %p268 = pneg %p141
      %p269 = pneg %p138
      %p270 = pneg %p162
      %p271 = pneg %p159
      %p272 = pneg %p190
      %p273 = pneg %p187
      %p274 = scmp.lt.s32.totalorder %s21, 1
      %s275 = scalar_select %p274, %s21, 1
      %p276 = scmp.lt.s32.totalorder %s22, 1
      %s277 = scalar_select %p276, %s22, 1
      %s278 = smul.addr %s277, 8
      %s279 = smul.addr %s275, 16
      %s280 = sadd.s32 %s278, %s279
      %s281 = smul.addr %s280, 4
      %s282 = scalar_lea.vmem %s6, %s281
      %p283 = scmp.lt.s32.totalorder %s21, 1
      %s284 = scalar_select %p283, %s21, 1
      %p285 = scmp.lt.s32.totalorder %s22, 1
      %s286 = scalar_select %p285, %s22, 1
      %s287 = smul.addr %s286, 2
      %s288 = smul.addr %s284, 4
      %s289 = sadd.s32 %s287, %s288
      %s290 = smul.addr %s289, 2
      %s291 = scalar_lea.vmem %s0, %s290
      %p292 = scmp.lt.s32.totalorder %s22, 1
      %s293 = scalar_select %p292, %s22, 1
      %s294 = smul.addr %s293, 2
      %s295 = scalar_lea.vmem %s1, %s294
      %p296 = scmp.lt.s32.totalorder %s21, 1
      %s297 = scalar_select %p296, %s21, 1
      %p298 = scmp.lt.s32.totalorder %s22, 1
      %s299 = scalar_select %p298, %s22, 1
      %s300 = smul.addr %s299, 8
      %s301 = smul.addr %s297, 16
      %s302 = sadd.s32 %s300, %s301
      %s303 = smul.addr %s302, 4
      %s304 = scalar_lea.vmem %s6, %s303
      %v306 = vld [vmem:[%s2] sm:$0xf]
      %v307 = vld [vmem:[%s291] sm:$0xf]
      %v309 = vunpack.c.l.b16 %v306
      %v310 = vpack.c.b16 %v309, %v309
      %311 = vrot.lane.b32.xlu0 %v310, 124
      %v312 = vpop.permute.xlu0 %311
      %v315 = vunpack.c.l.s4 1983009808
      %v316 = vunpack.c.0.s8 %v315
      %v317 = vlaneseq
      %v318 = vshrl.u32 %v317, 7
      %v319 = vsub.s32 %v316, %v318
      %v320 = vrot.slane %v307, %v319
      %v321 = vcombine.high %v320, %v320
      %322 = vrot.lane.b32.xlu0 %v320, 127
      %v323 = vpop.permute.xlu0 %322
      %324 = vrot.lane.b32.xlu0 %v321, 127
      %v325 = vpop.permute.xlu0 %324
      %vm326 = vcmask 1039360
      %v327 = vsel %vm326, %v323, %v325
      %vm328 = vcmask 31744
      %v330 = vsel %vm328, %v312, 0
      %vm332 = vcmask 1041408
      %v334 = vsel %vm332, %v327, 0
      %v337 = vsel %vm332, %v325, 0
      %339 = vmatprep.subr.bf16.mxu0 %v337
      %340 = vmatpush1.bf16.msra.mxu0 %v334
      %341 = vmatprep.subr.bf16.mxu0 0
      %342 = vmatpush1.bf16.msra.mxu0 0
      %343 = vmatprep.subr.bf16.mxu0 0
      %344 = vmatpush1.bf16.msra.mxu0 0
      %345 = vmatprep.subr.bf16.mxu0 0
      %346 = vmatpush1.bf16.msra.mxu0 0
      %347 = vmatprep.subr.bf16.mxu0 0
      %348 = vmatpush1.bf16.msra.mxu0 0
      %349 = vmatprep.subr.bf16.mxu0 0
      %350 = vmatpush1.bf16.msra.mxu0 0
      %351 = vmatprep.subr.bf16.mxu0 0
      %352 = vmatpush1.bf16.msra.mxu0 0
      %353 = vmatprep.subr.bf16.mxu0 0
      %354 = vmatpush1.bf16.msra.mxu0 0
      %355 = vmatprep.subr.bf16.mxu0 0
      %356 = vmatpush1.bf16.msra.mxu0 0
      %357 = vmatprep.subr.bf16.mxu0 0
      %358 = vmatpush1.bf16.msra.mxu0 0
      %359 = vmatprep.subr.bf16.mxu0 0
      %360 = vmatpush1.bf16.msra.mxu0 0
      %361 = vmatprep.subr.bf16.mxu0 0
      %362 = vmatpush1.bf16.msra.mxu0 0
      %363 = vmatprep.subr.bf16.mxu0 0
      %364 = vmatpush1.bf16.msra.mxu0 0
      %365 = vmatprep.subr.bf16.mxu0 0
      %366 = vmatpush1.bf16.msra.mxu0 0
      %367 = vmatprep.subr.bf16.mxu0 0
      %368 = vmatpush1.bf16.msra.mxu0 0
      %369 = vmatprep.subr.bf16.mxu0 0
      %370 = vmatpush1.bf16.msra.mxu0 0
      %371 = vmatprep.mubr.bf16.mxu0 0
      %372 = vmatmul.mubr.bf16.gmra.mrb[0].mxu0 %v330
      %v373 = vpop.f32.mrb[0].mxu0
      %v374 = vadd.f32 0.0, %v373
      %v375 = vpop.f32.mrb[0].mxu0
      %v376 = vadd.f32 0.0, %v375
      %v377 = vpop.f32.mrb[0].mxu0
      %v378 = vpop.f32.mrb[0].mxu0
      %379 = vdwg.mxu0
      %v381 = vsel %vm328, %v306, 0
      %v384 = vsel %vm332, %v320, 0
      %v387 = vsel %vm332, %v321, 0
      %389 = vmatprep.subr.bf16.mxu0 %v387
      %390 = vmatpush1.bf16.msra.mxu0 %v384
      %391 = vmatprep.subr.bf16.mxu0 0
      %392 = vmatpush1.bf16.msra.mxu0 0
      %393 = vmatprep.subr.bf16.mxu0 0
      %394 = vmatpush1.bf16.msra.mxu0 0
      %395 = vmatprep.subr.bf16.mxu0 0
      %396 = vmatpush1.bf16.msra.mxu0 0
      %397 = vmatprep.subr.bf16.mxu0 0
      %398 = vmatpush1.bf16.msra.mxu0 0
      %399 = vmatprep.subr.bf16.mxu0 0
      %400 = vmatpush1.bf16.msra.mxu0 0
      %401 = vmatprep.subr.bf16.mxu0 0
      %402 = vmatpush1.bf16.msra.mxu0 0
      %403 = vmatprep.subr.bf16.mxu0 0
      %404 = vmatpush1.bf16.msra.mxu0 0
      %405 = vmatprep.subr.bf16.mxu0 0
      %406 = vmatpush1.bf16.msra.mxu0 0
      %407 = vmatprep.subr.bf16.mxu0 0
      %408 = vmatpush1.bf16.msra.mxu0 0
      %409 = vmatprep.subr.bf16.mxu0 0
      %410 = vmatpush1.bf16.msra.mxu0 0
      %411 = vmatprep.subr.bf16.mxu0 0
      %412 = vmatpush1.bf16.msra.mxu0 0
      %413 = vmatprep.subr.bf16.mxu0 0
      %414 = vmatpush1.bf16.msra.mxu0 0
      %415 = vmatprep.subr.bf16.mxu0 0
      %416 = vmatpush1.bf16.msra.mxu0 0
      %417 = vmatprep.subr.bf16.mxu0 0
      %418 = vmatpush1.bf16.msra.mxu0 0
      %419 = vmatprep.subr.bf16.mxu0 0
      %420 = vmatpush1.bf16.msra.mxu0 0
      %421 = vmatprep.mubr.bf16.mxu0 0
      %422 = vmatmul.mubr.bf16.gmra.mrb[0].mxu0 %v381
      %v423 = vpop.f32.mrb[0].mxu0
      %v424 = vadd.f32 %v374, %v423
      %v425 = vpop.f32.mrb[0].mxu0
      %v426 = vadd.f32 %v376, %v425
      %v427 = vpop.f32.mrb[0].mxu0
      %v428 = vpop.f32.mrb[0].mxu0
      %429 = vdwg.mxu0
      %v430 = vld [vmem:[%s2] sm:$0xf]
      %v431 = vld [vmem:[%s291] sm:$0xf]
      %v433 = vunpack.c.l.b16 %v430
      %v434 = vpack.c.b16 %v433, %v433
      %435 = vrot.lane.b32.xlu0 %v434, 120
      %v436 = vpop.permute.xlu0 %435
      %v439 = vunpack.c.l.s4 1983009808
      %v440 = vunpack.c.0.s8 %v439
      %v441 = vlaneseq
      %v442 = vshrl.u32 %v441, 7
      %v443 = vsub.s32 %v440, %v442
      %v444 = vrot.slane %v431, %v443
      %v445 = vcombine.high %v444, %v444
      %446 = vrot.lane.b32.xlu0 %v444, 126
      %v447 = vpop.permute.xlu0 %446
      %448 = vrot.lane.b32.xlu0 %v445, 126
      %v449 = vpop.permute.xlu0 %448
      %vm450 = vcmask 1031168
      %v451 = vsel %vm450, %v447, %v449
      %v453 = vsel %vm328, %v436, 0
      %v456 = vsel %vm332, %v451, 0
      %v459 = vsel %vm332, %v449, 0
      %461 = vmatprep.subr.bf16.mxu0 %v459
      %462 = vmatpush1.bf16.msra.mxu0 %v456
      %463 = vmatprep.subr.bf16.mxu0 0
      %464 = vmatpush1.bf16.msra.mxu0 0
      %465 = vmatprep.subr.bf16.mxu0 0
      %466 = vmatpush1.bf16.msra.mxu0 0
      %467 = vmatprep.subr.bf16.mxu0 0
      %468 = vmatpush1.bf16.msra.mxu0 0
      %469 = vmatprep.subr.bf16.mxu0 0
      %470 = vmatpush1.bf16.msra.mxu0 0
      %471 = vmatprep.subr.bf16.mxu0 0
      %472 = vmatpush1.bf16.msra.mxu0 0
      %473 = vmatprep.subr.bf16.mxu0 0
      %474 = vmatpush1.bf16.msra.mxu0 0
      %475 = vmatprep.subr.bf16.mxu0 0
      %476 = vmatpush1.bf16.msra.mxu0 0
      %477 = vmatprep.subr.bf16.mxu0 0
      %478 = vmatpush1.bf16.msra.mxu0 0
      %479 = vmatprep.subr.bf16.mxu0 0
      %480 = vmatpush1.bf16.msra.mxu0 0
      %481 = vmatprep.subr.bf16.mxu0 0
      %482 = vmatpush1.bf16.msra.mxu0 0
      %483 = vmatprep.subr.bf16.mxu0 0
      %484 = vmatpush1.bf16.msra.mxu0 0
      %485 = vmatprep.subr.bf16.mxu0 0
      %486 = vmatpush1.bf16.msra.mxu0 0
      %487 = vmatprep.subr.bf16.mxu0 0
      %488 = vmatpush1.bf16.msra.mxu0 0
      %489 = vmatprep.subr.bf16.mxu0 0
      %490 = vmatpush1.bf16.msra.mxu0 0
      %491 = vmatprep.subr.bf16.mxu0 0
      %492 = vmatpush1.bf16.msra.mxu0 0
      %493 = vmatprep.mubr.bf16.mxu0 0
      %494 = vmatmul.mubr.bf16.gmra.mrb[0].mxu0 %v453
      %v495 = vpop.f32.mrb[0].mxu0
      %v496 = vadd.f32 0.0, %v495
      %v497 = vpop.f32.mrb[0].mxu0
      %v498 = vadd.f32 0.0, %v497
      %v499 = vpop.f32.mrb[0].mxu0
      %v500 = vpop.f32.mrb[0].mxu0
      %501 = vdwg.mxu0
      %v502 = vadd.f32 %v424, %v496
      %v503 = vadd.f32 %v426, %v498
      %v504 = vld [vmem:[%s2] sm:$0xf]
      %v505 = vld [vmem:[%s291] sm:$0xf]
      %v507 = vunpack.c.l.b16 %v504
      %v508 = vpack.c.b16 %v507, %v507
      %509 = vrot.lane.b32.xlu0 %v508, 116
      %v510 = vpop.permute.xlu0 %509
      %v513 = vunpack.c.l.s4 1983009808
      %v514 = vunpack.c.0.s8 %v513
      %v515 = vlaneseq
      %v516 = vshrl.u32 %v515, 7
      %v517 = vsub.s32 %v514, %v516
      %v518 = vrot.slane %v505, %v517
      %v519 = vcombine.high %v518, %v518
      %520 = vrot.lane.b32.xlu0 %v518, 110
      %v521 = vpop.permute.xlu0 %520
      %522 = vrot.lane.b32.xlu0 %v519, 110
      %v523 = vpop.permute.xlu0 %522
      %vm524 = vcmask 900096
      %v525 = vsel %vm524, %v521, %v523
      %v527 = vsel %vm328, %v510, 0
      %v530 = vsel %vm332, %v525, 0
      %v533 = vsel %vm332, %v523, 0
      %535 = vmatprep.subr.bf16.mxu0 %v533
      %536 = vmatpush1.bf16.msra.mxu0 %v530
      %537 = vmatprep.subr.bf16.mxu0 0
      %538 = vmatpush1.bf16.msra.mxu0 0
      %539 = vmatprep.subr.bf16.mxu0 0
      %540 = vmatpush1.bf16.msra.mxu0 0
      %541 = vmatprep.subr.bf16.mxu0 0
      %542 = vmatpush1.bf16.msra.mxu0 0
      %543 = vmatprep.subr.bf16.mxu0 0
      %544 = vmatpush1.bf16.msra.mxu0 0
      %545 = vmatprep.subr.bf16.mxu0 0
      %546 = vmatpush1.bf16.msra.mxu0 0
      %547 = vmatprep.subr.bf16.mxu0 0
      %548 = vmatpush1.bf16.msra.mxu0 0
      %549 = vmatprep.subr.bf16.mxu0 0
      %550 = vmatpush1.bf16.msra.mxu0 0
      %551 = vmatprep.subr.bf16.mxu0 0
      %552 = vmatpush1.bf16.msra.mxu0 0
      %553 = vmatprep.subr.bf16.mxu0 0
      %554 = vmatpush1.bf16.msra.mxu0 0
      %555 = vmatprep.subr.bf16.mxu0 0
      %556 = vmatpush1.bf16.msra.mxu0 0
      %557 = vmatprep.subr.bf16.mxu0 0
      %558 = vmatpush1.bf16.msra.mxu0 0
      %559 = vmatprep.subr.bf16.mxu0 0
      %560 = vmatpush1.bf16.msra.mxu0 0
      %561 = vmatprep.subr.bf16.mxu0 0
      %562 = vmatpush1.bf16.msra.mxu0 0
      %563 = vmatprep.subr.bf16.mxu0 0
      %564 = vmatpush1.bf16.msra.mxu0 0
      %565 = vmatprep.subr.bf16.mxu0 0
      %566 = vmatpush1.bf16.msra.mxu0 0
      %567 = vmatprep.mubr.bf16.mxu0 0
      %568 = vmatmul.mubr.bf16.gmra.mrb[0].mxu0 %v527
      %v569 = vpop.f32.mrb[0].mxu0
      %v570 = vadd.f32 0.0, %v569
      %v571 = vpop.f32.mrb[0].mxu0
      %v572 = vadd.f32 0.0, %v571
      %v573 = vpop.f32.mrb[0].mxu0
      %v574 = vpop.f32.mrb[0].mxu0
      %575 = vdwg.mxu0
      %v576 = vadd.f32 %v502, %v570
      %v577 = vadd.f32 %v503, %v572
      %v578 = vld [vmem:[%s2] sm:$0xf]
      %v579 = vld [vmem:[%s291] sm:$0xf]
      %v581 = vunpack.c.l.b16 %v578
      %v582 = vpack.c.b16 %v581, %v581
      %583 = vrot.lane.b32.xlu0 %v582, 112
      %v584 = vpop.permute.xlu0 %583
      %v587 = vunpack.c.l.s4 1983009808
      %v588 = vunpack.c.0.s8 %v587
      %v589 = vlaneseq
      %v590 = vshrl.u32 %v589, 7
      %v591 = vsub.s32 %v588, %v590
      %v592 = vrot.slane %v579, %v591
      %v593 = vcombine.high %v592, %v592
      %594 = vrot.lane.b32.xlu0 %v592, 109
      %v595 = vpop.permute.xlu0 %594
      %596 = vrot.lane.b32.xlu0 %v593, 109
      %v597 = vpop.permute.xlu0 %596
      %vm598 = vcmask 891904
      %v599 = vsel %vm598, %v595, %v597
      %v601 = vsel %vm328, %v584, 0
      %v604 = vsel %vm332, %v599, 0
      %v607 = vsel %vm332, %v597, 0
      %609 = vmatprep.subr.bf16.mxu0 %v607
      %610 = vmatpush1.bf16.msra.mxu0 %v604
      %611 = vmatprep.subr.bf16.mxu0 0
      %612 = vmatpush1.bf16.msra.mxu0 0
      %613 = vmatprep.subr.bf16.mxu0 0
      %614 = vmatpush1.bf16.msra.mxu0 0
      %615 = vmatprep.subr.bf16.mxu0 0
      %616 = vmatpush1.bf16.msra.mxu0 0
      %617 = vmatprep.subr.bf16.mxu0 0
      %618 = vmatpush1.bf16.msra.mxu0 0
      %619 = vmatprep.subr.bf16.mxu0 0
      %620 = vmatpush1.bf16.msra.mxu0 0
      %621 = vmatprep.subr.bf16.mxu0 0
      %622 = vmatpush1.bf16.msra.mxu0 0
      %623 = vmatprep.subr.bf16.mxu0 0
      %624 = vmatpush1.bf16.msra.mxu0 0
      %625 = vmatprep.subr.bf16.mxu0 0
      %626 = vmatpush1.bf16.msra.mxu0 0
      %627 = vmatprep.subr.bf16.mxu0 0
      %628 = vmatpush1.bf16.msra.mxu0 0
      %629 = vmatprep.subr.bf16.mxu0 0
      %630 = vmatpush1.bf16.msra.mxu0 0
      %631 = vmatprep.subr.bf16.mxu0 0
      %632 = vmatpush1.bf16.msra.mxu0 0
      %633 = vmatprep.subr.bf16.mxu0 0
      %634 = vmatpush1.bf16.msra.mxu0 0
      %635 = vmatprep.subr.bf16.mxu0 0
      %636 = vmatpush1.bf16.msra.mxu0 0
      %637 = vmatprep.subr.bf16.mxu0 0
      %638 = vmatpush1.bf16.msra.mxu0 0
      %639 = vmatprep.subr.bf16.mxu0 0
      %640 = vmatpush1.bf16.msra.mxu0 0
      %641 = vmatprep.mubr.bf16.mxu0 0
      %642 = vmatmul.mubr.bf16.gmra.mrb[0].mxu0 %v601
      %v643 = vpop.f32.mrb[0].mxu0
      %v644 = vadd.f32 0.0, %v643
      %v645 = vpop.f32.mrb[0].mxu0
      %v646 = vadd.f32 0.0, %v645
      %v647 = vpop.f32.mrb[0].mxu0
      %v648 = vpop.f32.mrb[0].mxu0
      %649 = vdwg.mxu0
      %v650 = vadd.f32 %v576, %v644
      %v651 = vadd.f32 %v577, %v646
      %v652 = vld [vmem:[%s2] sm:$0xf]
      %v653 = vld [vmem:[%s291] sm:$0xf]
      %v655 = vunpack.c.l.b16 %v652
      %v656 = vpack.c.b16 %v655, %v655
      %657 = vrot.lane.b32.xlu0 %v656, 108
      %v658 = vpop.permute.xlu0 %657
      %v661 = vunpack.c.l.s4 1983009808
      %v662 = vunpack.c.0.s8 %v661
      %v663 = vlaneseq
      %v664 = vshrl.u32 %v663, 7
      %v665 = vsub.s32 %v662, %v664
      %v666 = vrot.slane %v653, %v665
      %v667 = vcombine.high %v666, %v666
      %668 = vrot.lane.b32.xlu0 %v666, 108
      %v669 = vpop.permute.xlu0 %668
      %670 = vrot.lane.b32.xlu0 %v667, 108
      %v671 = vpop.permute.xlu0 %670
      %vm672 = vcmask 883712
      %v673 = vsel %vm672, %v669, %v671
      %v675 = vsel %vm328, %v658, 0
      %v678 = vsel %vm332, %v673, 0
      %v681 = vsel %vm332, %v671, 0
      %683 = vmatprep.subr.bf16.mxu0 %v681
      %684 = vmatpush1.bf16.msra.mxu0 %v678
      %685 = vmatprep.subr.bf16.mxu0 0
      %686 = vmatpush1.bf16.msra.mxu0 0
      %687 = vmatprep.subr.bf16.mxu0 0
      %688 = vmatpush1.bf16.msra.mxu0 0
      %689 = vmatprep.subr.bf16.mxu0 0
      %690 = vmatpush1.bf16.msra.mxu0 0
      %691 = vmatprep.subr.bf16.mxu0 0
      %692 = vmatpush1.bf16.msra.mxu0 0
      %693 = vmatprep.subr.bf16.mxu0 0
      %694 = vmatpush1.bf16.msra.mxu0 0
      %695 = vmatprep.subr.bf16.mxu0 0
      %696 = vmatpush1.bf16.msra.mxu0 0
      %697 = vmatprep.subr.bf16.mxu0 0
      %698 = vmatpush1.bf16.msra.mxu0 0
      %699 = vmatprep.subr.bf16.mxu0 0
      %700 = vmatpush1.bf16.msra.mxu0 0
      %701 = vmatprep.subr.bf16.mxu0 0
      %702 = vmatpush1.bf16.msra.mxu0 0
      %703 = vmatprep.subr.bf16.mxu0 0
      %704 = vmatpush1.bf16.msra.mxu0 0
      %705 = vmatprep.subr.bf16.mxu0 0
      %706 = vmatpush1.bf16.msra.mxu0 0
      %707 = vmatprep.subr.bf16.mxu0 0
      %708 = vmatpush1.bf16.msra.mxu0 0
      %709 = vmatprep.subr.bf16.mxu0 0
      %710 = vmatpush1.bf16.msra.mxu0 0
      %711 = vmatprep.subr.bf16.mxu0 0
      %712 = vmatpush1.bf16.msra.mxu0 0
      %713 = vmatprep.subr.bf16.mxu0 0
      %714 = vmatpush1.bf16.msra.mxu0 0
      %715 = vmatprep.mubr.bf16.mxu0 0
      %716 = vmatmul.mubr.bf16.gmra.mrb[0].mxu0 %v675
      %v717 = vpop.f32.mrb[0].mxu0
      %v718 = vadd.f32 0.0, %v717
      %v719 = vpop.f32.mrb[0].mxu0
      %v720 = vadd.f32 0.0, %v719
      %v721 = vpop.f32.mrb[0].mxu0
      %v722 = vpop.f32.mrb[0].mxu0
      %723 = vdwg.mxu0
      %v724 = vadd.f32 %v650, %v718
      %v725 = vadd.f32 %v651, %v720
      %v726 = vld [vmem:[%s2] sm:$0xf]
      %v727 = vld [vmem:[%s291] sm:$0xf]
      %v729 = vunpack.c.l.b16 %v726
      %v730 = vpack.c.b16 %v729, %v729
      %731 = vrot.lane.b32.xlu0 %v730, 104
      %v732 = vpop.permute.xlu0 %731
      %v735 = vunpack.c.l.s4 1983009808
      %v736 = vunpack.c.0.s8 %v735
      %v737 = vlaneseq
      %v738 = vshrl.u32 %v737, 7
      %v739 = vsub.s32 %v736, %v738
      %v740 = vrot.slane %v727, %v739
      %v741 = vcombine.high %v740, %v740
      %742 = vrot.lane.b32.xlu0 %v740, 92
      %v743 = vpop.permute.xlu0 %742
      %744 = vrot.lane.b32.xlu0 %v741, 92
      %v745 = vpop.permute.xlu0 %744
      %vm746 = vcmask 752640
      %v747 = vsel %vm746, %v743, %v745
      %v749 = vsel %vm328, %v732, 0
      %v752 = vsel %vm332, %v747, 0
      %v755 = vsel %vm332, %v745, 0
      %757 = vmatprep.subr.bf16.mxu0 %v755
      %758 = vmatpush1.bf16.msra.mxu0 %v752
      %759 = vmatprep.subr.bf16.mxu0 0
      %760 = vmatpush1.bf16.msra.mxu0 0
      %761 = vmatprep.subr.bf16.mxu0 0
      %762 = vmatpush1.bf16.msra.mxu0 0
      %763 = vmatprep.subr.bf16.mxu0 0
      %764 = vmatpush1.bf16.msra.mxu0 0
      %765 = vmatprep.subr.bf16.mxu0 0
      %766 = vmatpush1.bf16.msra.mxu0 0
      %767 = vmatprep.subr.bf16.mxu0 0
      %768 = vmatpush1.bf16.msra.mxu0 0
      %769 = vmatprep.subr.bf16.mxu0 0
      %770 = vmatpush1.bf16.msra.mxu0 0
      %771 = vmatprep.subr.bf16.mxu0 0
      %772 = vmatpush1.bf16.msra.mxu0 0
      %773 = vmatprep.subr.bf16.mxu0 0
      %774 = vmatpush1.bf16.msra.mxu0 0
      %775 = vmatprep.subr.bf16.mxu0 0
      %776 = vmatpush1.bf16.msra.mxu0 0
      %777 = vmatprep.subr.bf16.mxu0 0
      %778 = vmatpush1.bf16.msra.mxu0 0
      %779 = vmatprep.subr.bf16.mxu0 0
      %780 = vmatpush1.bf16.msra.mxu0 0
      %781 = vmatprep.subr.bf16.mxu0 0
      %782 = vmatpush1.bf16.msra.mxu0 0
      %783 = vmatprep.subr.bf16.mxu0 0
      %784 = vmatpush1.bf16.msra.mxu0 0
      %785 = vmatprep.subr.bf16.mxu0 0
      %786 = vmatpush1.bf16.msra.mxu0 0
      %787 = vmatprep.subr.bf16.mxu0 0
      %788 = vmatpush1.bf16.msra.mxu0 0
      %789 = vmatprep.mubr.bf16.mxu0 0
      %790 = vmatmul.mubr.bf16.gmra.mrb[0].mxu0 %v749
      %v791 = vpop.f32.mrb[0].mxu0
      %v792 = vadd.f32 0.0, %v791
      %v793 = vpop.f32.mrb[0].mxu0
      %v794 = vadd.f32 0.0, %v793
      %v795 = vpop.f32.mrb[0].mxu0
      %v796 = vpop.f32.mrb[0].mxu0
      %797 = vdwg.mxu0
      %v798 = vadd.f32 %v724, %v792
      %v799 = vadd.f32 %v725, %v794
      %v800 = vld [vmem:[%s2] sm:$0xf]
      %v801 = vld [vmem:[%s291] sm:$0xf]
      %v803 = vunpack.c.l.b16 %v800
      %v804 = vpack.c.b16 %v803, %v803
      %805 = vrot.lane.b32.xlu0 %v804, 100
      %v806 = vpop.permute.xlu0 %805
      %v809 = vunpack.c.l.s4 1983009808
      %v810 = vunpack.c.0.s8 %v809
      %v811 = vlaneseq
      %v812 = vshrl.u32 %v811, 7
      %v813 = vsub.s32 %v810, %v812
      %v814 = vrot.slane %v801, %v813
      %v815 = vcombine.high %v814, %v814
      %816 = vrot.lane.b32.xlu0 %v814, 91
      %v817 = vpop.permute.xlu0 %816
      %818 = vrot.lane.b32.xlu0 %v815, 91
      %v819 = vpop.permute.xlu0 %818
      %vm820 = vcmask 744448
      %v821 = vsel %vm820, %v817, %v819
      %v823 = vsel %vm328, %v806, 0
      %v826 = vsel %vm332, %v821, 0
      %v829 = vsel %vm332, %v819, 0
      %831 = vmatprep.subr.bf16.mxu0 %v829
      %832 = vmatpush1.bf16.msra.mxu0 %v826
      %833 = vmatprep.subr.bf16.mxu0 0
      %834 = vmatpush1.bf16.msra.mxu0 0
      %835 = vmatprep.subr.bf16.mxu0 0
      %836 = vmatpush1.bf16.msra.mxu0 0
      %837 = vmatprep.subr.bf16.mxu0 0
      %838 = vmatpush1.bf16.msra.mxu0 0
      %839 = vmatprep.subr.bf16.mxu0 0
      %840 = vmatpush1.bf16.msra.mxu0 0
      %841 = vmatprep.subr.bf16.mxu0 0
      %842 = vmatpush1.bf16.msra.mxu0 0
      %843 = vmatprep.subr.bf16.mxu0 0
      %844 = vmatpush1.bf16.msra.mxu0 0
      %845 = vmatprep.subr.bf16.mxu0 0
      %846 = vmatpush1.bf16.msra.mxu0 0
      %847 = vmatprep.subr.bf16.mxu0 0
      %848 = vmatpush1.bf16.msra.mxu0 0
      %849 = vmatprep.subr.bf16.mxu0 0
      %850 = vmatpush1.bf16.msra.mxu0 0
      %851 = vmatprep.subr.bf16.mxu0 0
      %852 = vmatpush1.bf16.msra.mxu0 0
      %853 = vmatprep.subr.bf16.mxu0 0
      %854 = vmatpush1.bf16.msra.mxu0 0
      %855 = vmatprep.subr.bf16.mxu0 0
      %856 = vmatpush1.bf16.msra.mxu0 0
      %857 = vmatprep.subr.bf16.mxu0 0
      %858 = vmatpush1.bf16.msra.mxu0 0
      %859 = vmatprep.subr.bf16.mxu0 0
      %860 = vmatpush1.bf16.msra.mxu0 0
      %861 = vmatprep.subr.bf16.mxu0 0
      %862 = vmatpush1.bf16.msra.mxu0 0
      %863 = vmatprep.mubr.bf16.mxu0 0
      %864 = vmatmul.mubr.bf16.gmra.mrb[0].mxu0 %v823
      %v865 = vpop.f32.mrb[0].mxu0
      %v866 = vadd.f32 0.0, %v865
      %v867 = vpop.f32.mrb[0].mxu0
      %v868 = vadd.f32 0.0, %v867
      %v869 = vpop.f32.mrb[0].mxu0
      %v870 = vpop.f32.mrb[0].mxu0
      %871 = vdwg.mxu0
      %v872 = vadd.f32 %v798, %v866
      %v873 = vadd.f32 %v799, %v868
      %v874 = vld [vmem:[%s2] sm:$0xf]
      %v875 = vld [vmem:[%s291] sm:$0xf]
      %v877 = vunpack.c.l.b16 %v874
      %v878 = vpack.c.b16 %v877, %v877
      %879 = vrot.lane.b32.xlu0 %v878, 96
      %v880 = vpop.permute.xlu0 %879
      %v883 = vunpack.c.l.s4 1983009808
      %v884 = vunpack.c.0.s8 %v883
      %v885 = vlaneseq
      %v886 = vshrl.u32 %v885, 7
      %v887 = vsub.s32 %v884, %v886
      %v888 = vrot.slane %v875, %v887
      %v889 = vcombine.high %v888, %v888
      %890 = vrot.lane.b32.xlu0 %v888, 90
      %v891 = vpop.permute.xlu0 %890
      %892 = vrot.lane.b32.xlu0 %v889, 90
      %v893 = vpop.permute.xlu0 %892
      %vm894 = vcmask 736256
      %v895 = vsel %vm894, %v891, %v893
      %v897 = vsel %vm328, %v880, 0
      %v900 = vsel %vm332, %v895, 0
      %v903 = vsel %vm332, %v893, 0
      %905 = vmatprep.subr.bf16.mxu0 %v903
      %906 = vmatpush1.bf16.msra.mxu0 %v900
      %907 = vmatprep.subr.bf16.mxu0 0
      %908 = vmatpush1.bf16.msra.mxu0 0
      %909 = vmatprep.subr.bf16.mxu0 0
      %910 = vmatpush1.bf16.msra.mxu0 0
      %911 = vmatprep.subr.bf16.mxu0 0
      %912 = vmatpush1.bf16.msra.mxu0 0
      %913 = vmatprep.subr.bf16.mxu0 0
      %914 = vmatpush1.bf16.msra.mxu0 0
      %915 = vmatprep.subr.bf16.mxu0 0
      %916 = vmatpush1.bf16.msra.mxu0 0
      %917 = vmatprep.subr.bf16.mxu0 0
      %918 = vmatpush1.bf16.msra.mxu0 0
      %919 = vmatprep.subr.bf16.mxu0 0
      %920 = vmatpush1.bf16.msra.mxu0 0
      %921 = vmatprep.subr.bf16.mxu0 0
      %922 = vmatpush1.bf16.msra.mxu0 0
      %923 = vmatprep.subr.bf16.mxu0 0
      %924 = vmatpush1.bf16.msra.mxu0 0
      %925 = vmatprep.subr.bf16.mxu0 0
      %926 = vmatpush1.bf16.msra.mxu0 0
      %927 = vmatprep.subr.bf16.mxu0 0
      %928 = vmatpush1.bf16.msra.mxu0 0
      %929 = vmatprep.subr.bf16.mxu0 0
      %930 = vmatpush1.bf16.msra.mxu0 0
      %931 = vmatprep.subr.bf16.mxu0 0
      %932 = vmatpush1.bf16.msra.mxu0 0
      %933 = vmatprep.subr.bf16.mxu0 0
      %934 = vmatpush1.bf16.msra.mxu0 0
      %935 = vmatprep.subr.bf16.mxu0 0
      %936 = vmatpush1.bf16.msra.mxu0 0
      %937 = vmatprep.mubr.bf16.mxu0 0
      %938 = vmatmul.mubr.bf16.gmra.mrb[0].mxu0 %v897
      %v939 = vpop.f32.mrb[0].mxu0
      %v940 = vadd.f32 0.0, %v939
      %v941 = vpop.f32.mrb[0].mxu0
      %v942 = vadd.f32 0.0, %v941
      %v943 = vpop.f32.mrb[0].mxu0
      %v944 = vpop.f32.mrb[0].mxu0
      %945 = vdwg.mxu0
      %v946 = vadd.f32 %v872, %v940
      %v947 = vadd.f32 %v873, %v942
      %v948 = vld [vmem:[%s3] sm:$0xff]
      %950 = vset.pattern.permute.xlu0 0
      %951 = vperm.xlu0 %950, %v948
      %v952 = vpop.permute.xlu0 %951
      %v954 = vadd.f32 %v946, %v952
      %v955 = vadd.f32 %v947, %v952
      %v956 = vmax.f32 %v954, 0.0
      %v957 = vmax.f32 %v955, 0.0
      %v958 = vld [vmem:[%s295] sm:$0x3]
      %v960 = vlaneseq
      %v961 = vshrl.u32 %v960, 7
      %v962 = vsub.s32 0, %v961
      %v963 = vrot.slane %v958, %v962
      %v964 = vlaneseq
      %v965 = vshrl.u32 %v964, 7
      %v966 = vsub.s32 1, %v965
      %v967 = vrot.slane %v958, %v966
      %v970 = vmul.f32 %v956, %v963
      %v971 = vmul.f32 %v957, %v967
      %v972 = vpack.c.bf16 %v970, %v970
      %v973 = vpack.c.bf16 %v971, %v971
      %v974 = vld [vmem:[%s4] sm:$0x3]
      %v977 = vunpack.c.l.s4 1983009808
      %v978 = vunpack.c.0.s8 %v977
      %v979 = vlaneseq
      %v980 = vshrl.u32 %v979, 7
      %v981 = vsub.s32 %v978, %v980
      %v982 = vrot.slane %v974, %v981
      %983 = vrot.lane.b32.xlu0 %v982, 120
      %v984 = vpop.permute.xlu0 %983
      %987 = vrot.lane.b32.xlu0 %v972, 127
      %v988 = vpop.permute.xlu0 %987
      %989 = vrot.lane.b32.xlu0 %v973, 127
      %v990 = vpop.permute.xlu0 %989
      %v991 = vsel %vm326, %v988, %v990
      %vm992 = vcmask 64512
      %v994 = vsel %vm992, %v984, 0
      %vm996 = vcmask 1043456
      %v998 = vsel %vm996, %v991, 0
      %v1001 = vsel %vm996, %v990, 0
      %1003 = vmatprep.subr.bf16.mxu0 %v1001
      %1004 = vmatpush1.bf16.msra.mxu0 %v998
      %1005 = vmatprep.subr.bf16.mxu0 0
      %1006 = vmatpush1.bf16.msra.mxu0 0
      %1007 = vmatprep.subr.bf16.mxu0 0
      %1008 = vmatpush1.bf16.msra.mxu0 0
      %1009 = vmatprep.subr.bf16.mxu0 0
      %1010 = vmatpush1.bf16.msra.mxu0 0
      %1011 = vmatprep.subr.bf16.mxu0 0
      %1012 = vmatpush1.bf16.msra.mxu0 0
      %1013 = vmatprep.subr.bf16.mxu0 0
      %1014 = vmatpush1.bf16.msra.mxu0 0
      %1015 = vmatprep.subr.bf16.mxu0 0
      %1016 = vmatpush1.bf16.msra.mxu0 0
      %1017 = vmatprep.subr.bf16.mxu0 0
      %1018 = vmatpush1.bf16.msra.mxu0 0
      %1019 = vmatprep.subr.bf16.mxu0 0
      %1020 = vmatpush1.bf16.msra.mxu0 0
      %1021 = vmatprep.subr.bf16.mxu0 0
      %1022 = vmatpush1.bf16.msra.mxu0 0
      %1023 = vmatprep.subr.bf16.mxu0 0
      %1024 = vmatpush1.bf16.msra.mxu0 0
      %1025 = vmatprep.subr.bf16.mxu0 0
      %1026 = vmatpush1.bf16.msra.mxu0 0
      %1027 = vmatprep.subr.bf16.mxu0 0
      %1028 = vmatpush1.bf16.msra.mxu0 0
      %1029 = vmatprep.subr.bf16.mxu0 0
      %1030 = vmatpush1.bf16.msra.mxu0 0
      %1031 = vmatprep.subr.bf16.mxu0 0
      %1032 = vmatpush1.bf16.msra.mxu0 0
      %1033 = vmatprep.subr.bf16.mxu0 0
      %1034 = vmatpush1.bf16.msra.mxu0 0
      %1035 = vmatprep.mubr.bf16.mxu0 0
      %1036 = vmatmul.mubr.bf16.gmra.mrb[0].mxu0 %v994
      %v1037 = vpop.f32.mrb[0].mxu0
      %v1038 = vadd.f32 0.0, %v1037
      %v1039 = vpop.f32.mrb[0].mxu0
      %v1040 = vadd.f32 0.0, %v1039
      %v1041 = vpop.f32.mrb[0].mxu0
      %v1042 = vpop.f32.mrb[0].mxu0
      %1043 = vdwg.mxu0
      %v1045 = vsel %vm992, %v974, 0
      %v1048 = vsel %vm996, %v972, 0
      %v1051 = vsel %vm996, %v973, 0
      %1053 = vmatprep.subr.bf16.mxu0 %v1051
      %1054 = vmatpush1.bf16.msra.mxu0 %v1048
      %1055 = vmatprep.subr.bf16.mxu0 0
      %1056 = vmatpush1.bf16.msra.mxu0 0
      %1057 = vmatprep.subr.bf16.mxu0 0
      %1058 = vmatpush1.bf16.msra.mxu0 0
      %1059 = vmatprep.subr.bf16.mxu0 0
      %1060 = vmatpush1.bf16.msra.mxu0 0
      %1061 = vmatprep.subr.bf16.mxu0 0
      %1062 = vmatpush1.bf16.msra.mxu0 0
      %1063 = vmatprep.subr.bf16.mxu0 0
      %1064 = vmatpush1.bf16.msra.mxu0 0
      %1065 = vmatprep.subr.bf16.mxu0 0
      %1066 = vmatpush1.bf16.msra.mxu0 0
      %1067 = vmatprep.subr.bf16.mxu0 0
      %1068 = vmatpush1.bf16.msra.mxu0 0
      %1069 = vmatprep.subr.bf16.mxu0 0
      %1070 = vmatpush1.bf16.msra.mxu0 0
      %1071 = vmatprep.subr.bf16.mxu0 0
      %1072 = vmatpush1.bf16.msra.mxu0 0
      %1073 = vmatprep.subr.bf16.mxu0 0
      %1074 = vmatpush1.bf16.msra.mxu0 0
      %1075 = vmatprep.subr.bf16.mxu0 0
      %1076 = vmatpush1.bf16.msra.mxu0 0
      %1077 = vmatprep.subr.bf16.mxu0 0
      %1078 = vmatpush1.bf16.msra.mxu0 0
      %1079 = vmatprep.subr.bf16.mxu0 0
      %1080 = vmatpush1.bf16.msra.mxu0 0
      %1081 = vmatprep.subr.bf16.mxu0 0
      %1082 = vmatpush1.bf16.msra.mxu0 0
      %1083 = vmatprep.subr.bf16.mxu0 0
      %1084 = vmatpush1.bf16.msra.mxu0 0
      %1085 = vmatprep.mubr.bf16.mxu0 0
      %1086 = vmatmul.mubr.bf16.gmra.mrb[0].mxu0 %v1045
      %v1087 = vpop.f32.mrb[0].mxu0
      %v1088 = vadd.f32 %v1038, %v1087
      %v1089 = vpop.f32.mrb[0].mxu0
      %v1090 = vadd.f32 %v1040, %v1089
      %v1091 = vpop.f32.mrb[0].mxu0
      %v1092 = vpop.f32.mrb[0].mxu0
      %1093 = vdwg.mxu0
      %1094 = vrot.lane.b32.xlu0 %v982, 112
      %v1095 = vpop.permute.xlu0 %1094
      %1096 = vrot.lane.b32.xlu0 %v972, 110
      %v1097 = vpop.permute.xlu0 %1096
      %1098 = vrot.lane.b32.xlu0 %v973, 110
      %v1099 = vpop.permute.xlu0 %1098
      %v1100 = vsel %vm524, %v1097, %v1099
      %v1102 = vsel %vm992, %v1095, 0
      %v1105 = vsel %vm996, %v1100, 0
      %v1108 = vsel %vm996, %v1099, 0
      %1110 = vmatprep.subr.bf16.mxu0 %v1108
      %1111 = vmatpush1.bf16.msra.mxu0 %v1105
      %1112 = vmatprep.subr.bf16.mxu0 0
      %1113 = vmatpush1.bf16.msra.mxu0 0
      %1114 = vmatprep.subr.bf16.mxu0 0
      %1115 = vmatpush1.bf16.msra.mxu0 0
      %1116 = vmatprep.subr.bf16.mxu0 0
      %1117 = vmatpush1.bf16.msra.mxu0 0
      %1118 = vmatprep.subr.bf16.mxu0 0
      %1119 = vmatpush1.bf16.msra.mxu0 0
      %1120 = vmatprep.subr.bf16.mxu0 0
      %1121 = vmatpush1.bf16.msra.mxu0 0
      %1122 = vmatprep.subr.bf16.mxu0 0
      %1123 = vmatpush1.bf16.msra.mxu0 0
      %1124 = vmatprep.subr.bf16.mxu0 0
      %1125 = vmatpush1.bf16.msra.mxu0 0
      %1126 = vmatprep.subr.bf16.mxu0 0
      %1127 = vmatpush1.bf16.msra.mxu0 0
      %1128 = vmatprep.subr.bf16.mxu0 0
      %1129 = vmatpush1.bf16.msra.mxu0 0
      %1130 = vmatprep.subr.bf16.mxu0 0
      %1131 = vmatpush1.bf16.msra.mxu0 0
      %1132 = vmatprep.subr.bf16.mxu0 0
      %1133 = vmatpush1.bf16.msra.mxu0 0
      %1134 = vmatprep.subr.bf16.mxu0 0
      %1135 = vmatpush1.bf16.msra.mxu0 0
      %1136 = vmatprep.subr.bf16.mxu0 0
      %1137 = vmatpush1.bf16.msra.mxu0 0
      %1138 = vmatprep.subr.bf16.mxu0 0
      %1139 = vmatpush1.bf16.msra.mxu0 0
      %1140 = vmatprep.subr.bf16.mxu0 0
      %1141 = vmatpush1.bf16.msra.mxu0 0
      %1142 = vmatprep.mubr.bf16.mxu0 0
      %1143 = vmatmul.mubr.bf16.gmra.mrb[0].mxu0 %v1102
      %v1144 = vpop.f32.mrb[0].mxu0
      %v1145 = vadd.f32 0.0, %v1144
      %v1146 = vpop.f32.mrb[0].mxu0
      %v1147 = vadd.f32 0.0, %v1146
      %v1148 = vpop.f32.mrb[0].mxu0
      %v1149 = vpop.f32.mrb[0].mxu0
      %1150 = vdwg.mxu0
      %v1151 = vadd.f32 %v1088, %v1145
      %v1152 = vadd.f32 %v1090, %v1147
      %1153 = vrot.lane.b32.xlu0 %v982, 104
      %v1154 = vpop.permute.xlu0 %1153
      %1155 = vrot.lane.b32.xlu0 %v972, 109
      %v1156 = vpop.permute.xlu0 %1155
      %1157 = vrot.lane.b32.xlu0 %v973, 109
      %v1158 = vpop.permute.xlu0 %1157
      %v1159 = vsel %vm598, %v1156, %v1158
      %v1161 = vsel %vm992, %v1154, 0
      %v1164 = vsel %vm996, %v1159, 0
      %v1167 = vsel %vm996, %v1158, 0
      %1169 = vmatprep.subr.bf16.mxu0 %v1167
      %1170 = vmatpush1.bf16.msra.mxu0 %v1164
      %1171 = vmatprep.subr.bf16.mxu0 0
      %1172 = vmatpush1.bf16.msra.mxu0 0
      %1173 = vmatprep.subr.bf16.mxu0 0
      %1174 = vmatpush1.bf16.msra.mxu0 0
      %1175 = vmatprep.subr.bf16.mxu0 0
      %1176 = vmatpush1.bf16.msra.mxu0 0
      %1177 = vmatprep.subr.bf16.mxu0 0
      %1178 = vmatpush1.bf16.msra.mxu0 0
      %1179 = vmatprep.subr.bf16.mxu0 0
      %1180 = vmatpush1.bf16.msra.mxu0 0
      %1181 = vmatprep.subr.bf16.mxu0 0
      %1182 = vmatpush1.bf16.msra.mxu0 0
      %1183 = vmatprep.subr.bf16.mxu0 0
      %1184 = vmatpush1.bf16.msra.mxu0 0
      %1185 = vmatprep.subr.bf16.mxu0 0
      %1186 = vmatpush1.bf16.msra.mxu0 0
      %1187 = vmatprep.subr.bf16.mxu0 0
      %1188 = vmatpush1.bf16.msra.mxu0 0
      %1189 = vmatprep.subr.bf16.mxu0 0
      %1190 = vmatpush1.bf16.msra.mxu0 0
      %1191 = vmatprep.subr.bf16.mxu0 0
      %1192 = vmatpush1.bf16.msra.mxu0 0
      %1193 = vmatprep.subr.bf16.mxu0 0
      %1194 = vmatpush1.bf16.msra.mxu0 0
      %1195 = vmatprep.subr.bf16.mxu0 0
      %1196 = vmatpush1.bf16.msra.mxu0 0
      %1197 = vmatprep.subr.bf16.mxu0 0
      %1198 = vmatpush1.bf16.msra.mxu0 0
      %1199 = vmatprep.subr.bf16.mxu0 0
      %1200 = vmatpush1.bf16.msra.mxu0 0
      %1201 = vmatprep.mubr.bf16.mxu0 0
      %1202 = vmatmul.mubr.bf16.gmra.mrb[0].mxu0 %v1161
      %v1203 = vpop.f32.mrb[0].mxu0
      %v1204 = vadd.f32 0.0, %v1203
      %v1205 = vpop.f32.mrb[0].mxu0
      %v1206 = vadd.f32 0.0, %v1205
      %v1207 = vpop.f32.mrb[0].mxu0
      %v1208 = vpop.f32.mrb[0].mxu0
      %1209 = vdwg.mxu0
      %v1210 = vadd.f32 %v1151, %v1204
      %v1211 = vadd.f32 %v1152, %v1206
      %v1212 = vld [vmem:[%s5] sm:$0xf]
      %1214 = vset.pattern.permute.xlu0 0
      %1215 = vperm.xlu0 %1214, %v1212
      %v1216 = vpop.permute.xlu0 %1215
      %v1218 = vadd.f32 %v1210, %v1216
      %v1219 = vadd.f32 %v1211, %v1216
      %v1220 = vmax.f32 %v1218, 0.0
      %v1221 = vmax.f32 %v1219, 0.0
      %v1224 = vcombine.low %v1220, %v1221
      %vm1226 = vcmask 130052
      %vm1227 = vmor %vm1226, %vm996
      %1228 = vst.msk [vmem:[%s304] sm:$0xff] %vm1227, %v1224
      %s1229 = scalar_lea.vmem %s4, 2
      %v1230 = vld [vmem:[%s1229] sm:$0x3]
      %v1233 = vunpack.c.l.s4 1983009808
      %v1234 = vunpack.c.0.s8 %v1233
      %v1235 = vlaneseq
      %v1236 = vshrl.u32 %v1235, 7
      %v1237 = vsub.s32 %v1234, %v1236
      %v1238 = vrot.slane %v1230, %v1237
      %1239 = vrot.lane.b32.xlu0 %v1238, 120
      %v1240 = vpop.permute.xlu0 %1239
      %1241 = vrot.lane.b32.xlu0 %v972, 126
      %v1242 = vpop.permute.xlu0 %1241
      %1243 = vrot.lane.b32.xlu0 %v973, 126
      %v1244 = vpop.permute.xlu0 %1243
      %v1245 = vsel %vm450, %v1242, %v1244
      %v1247 = vsel %vm992, %v1240, 0
      %v1250 = vsel %vm996, %v1245, 0
      %v1253 = vsel %vm996, %v1244, 0
      %1255 = vmatprep.subr.bf16.mxu0 %v1253
      %1256 = vmatpush1.bf16.msra.mxu0 %v1250
      %1257 = vmatprep.subr.bf16.mxu0 0
      %1258 = vmatpush1.bf16.msra.mxu0 0
      %1259 = vmatprep.subr.bf16.mxu0 0
      %1260 = vmatpush1.bf16.msra.mxu0 0
      %1261 = vmatprep.subr.bf16.mxu0 0
      %1262 = vmatpush1.bf16.msra.mxu0 0
      %1263 = vmatprep.subr.bf16.mxu0 0
      %1264 = vmatpush1.bf16.msra.mxu0 0
      %1265 = vmatprep.subr.bf16.mxu0 0
      %1266 = vmatpush1.bf16.msra.mxu0 0
      %1267 = vmatprep.subr.bf16.mxu0 0
      %1268 = vmatpush1.bf16.msra.mxu0 0
      %1269 = vmatprep.subr.bf16.mxu0 0
      %1270 = vmatpush1.bf16.msra.mxu0 0
      %1271 = vmatprep.subr.bf16.mxu0 0
      %1272 = vmatpush1.bf16.msra.mxu0 0
      %1273 = vmatprep.subr.bf16.mxu0 0
      %1274 = vmatpush1.bf16.msra.mxu0 0
      %1275 = vmatprep.subr.bf16.mxu0 0
      %1276 = vmatpush1.bf16.msra.mxu0 0
      %1277 = vmatprep.subr.bf16.mxu0 0
      %1278 = vmatpush1.bf16.msra.mxu0 0
      %1279 = vmatprep.subr.bf16.mxu0 0
      %1280 = vmatpush1.bf16.msra.mxu0 0
      %1281 = vmatprep.subr.bf16.mxu0 0
      %1282 = vmatpush1.bf16.msra.mxu0 0
      %1283 = vmatprep.subr.bf16.mxu0 0
      %1284 = vmatpush1.bf16.msra.mxu0 0
      %1285 = vmatprep.subr.bf16.mxu0 0
      %1286 = vmatpush1.bf16.msra.mxu0 0
      %1287 = vmatprep.mubr.bf16.mxu0 0
      %1288 = vmatmul.mubr.bf16.gmra.mrb[0].mxu0 %v1247
      %v1289 = vpop.f32.mrb[0].mxu0
      %v1290 = vadd.f32 0.0, %v1289
      %v1291 = vpop.f32.mrb[0].mxu0
      %v1292 = vadd.f32 0.0, %v1291
      %v1293 = vpop.f32.mrb[0].mxu0
      %v1294 = vpop.f32.mrb[0].mxu0
      %1295 = vdwg.mxu0
      %v1297 = vsel %vm992, %v1230, 0
      %1299 = vmatprep.subr.bf16.mxu0 %v1001
      %1300 = vmatpush1.bf16.msra.mxu0 %v998
      %1301 = vmatprep.subr.bf16.mxu0 0
      %1302 = vmatpush1.bf16.msra.mxu0 0
      %1303 = vmatprep.subr.bf16.mxu0 0
      %1304 = vmatpush1.bf16.msra.mxu0 0
      %1305 = vmatprep.subr.bf16.mxu0 0
      %1306 = vmatpush1.bf16.msra.mxu0 0
      %1307 = vmatprep.subr.bf16.mxu0 0
      %1308 = vmatpush1.bf16.msra.mxu0 0
      %1309 = vmatprep.subr.bf16.mxu0 0
      %1310 = vmatpush1.bf16.msra.mxu0 0
      %1311 = vmatprep.subr.bf16.mxu0 0
      %1312 = vmatpush1.bf16.msra.mxu0 0
      %1313 = vmatprep.subr.bf16.mxu0 0
      %1314 = vmatpush1.bf16.msra.mxu0 0
      %1315 = vmatprep.subr.bf16.mxu0 0
      %1316 = vmatpush1.bf16.msra.mxu0 0
      %1317 = vmatprep.subr.bf16.mxu0 0
      %1318 = vmatpush1.bf16.msra.mxu0 0
      %1319 = vmatprep.subr.bf16.mxu0 0
      %1320 = vmatpush1.bf16.msra.mxu0 0
      %1321 = vmatprep.subr.bf16.mxu0 0
      %1322 = vmatpush1.bf16.msra.mxu0 0
      %1323 = vmatprep.subr.bf16.mxu0 0
      %1324 = vmatpush1.bf16.msra.mxu0 0
      %1325 = vmatprep.subr.bf16.mxu0 0
      %1326 = vmatpush1.bf16.msra.mxu0 0
      %1327 = vmatprep.subr.bf16.mxu0 0
      %1328 = vmatpush1.bf16.msra.mxu0 0
      %1329 = vmatprep.subr.bf16.mxu0 0
      %1330 = vmatpush1.bf16.msra.mxu0 0
      %1331 = vmatprep.mubr.bf16.mxu0 0
      %1332 = vmatmul.mubr.bf16.gmra.mrb[0].mxu0 %v1297
      %v1333 = vpop.f32.mrb[0].mxu0
      %v1334 = vadd.f32 %v1290, %v1333
      %v1335 = vpop.f32.mrb[0].mxu0
      %v1336 = vadd.f32 %v1292, %v1335
      %v1337 = vpop.f32.mrb[0].mxu0
      %v1338 = vpop.f32.mrb[0].mxu0
      %1339 = vdwg.mxu0
      %1340 = vrot.lane.b32.xlu0 %v1238, 112
      %v1341 = vpop.permute.xlu0 %1340
      %v1343 = vsel %vm992, %v1341, 0
      %1345 = vmatprep.subr.bf16.mxu0 %v1167
      %1346 = vmatpush1.bf16.msra.mxu0 %v1164
      %1347 = vmatprep.subr.bf16.mxu0 0
      %1348 = vmatpush1.bf16.msra.mxu0 0
      %1349 = vmatprep.subr.bf16.mxu0 0
      %1350 = vmatpush1.bf16.msra.mxu0 0
      %1351 = vmatprep.subr.bf16.mxu0 0
      %1352 = vmatpush1.bf16.msra.mxu0 0
      %1353 = vmatprep.subr.bf16.mxu0 0
      %1354 = vmatpush1.bf16.msra.mxu0 0
      %1355 = vmatprep.subr.bf16.mxu0 0
      %1356 = vmatpush1.bf16.msra.mxu0 0
      %1357 = vmatprep.subr.bf16.mxu0 0
      %1358 = vmatpush1.bf16.msra.mxu0 0
      %1359 = vmatprep.subr.bf16.mxu0 0
      %1360 = vmatpush1.bf16.msra.mxu0 0
      %1361 = vmatprep.subr.bf16.mxu0 0
      %1362 = vmatpush1.bf16.msra.mxu0 0
      %1363 = vmatprep.subr.bf16.mxu0 0
      %1364 = vmatpush1.bf16.msra.mxu0 0
      %1365 = vmatprep.subr.bf16.mxu0 0
      %1366 = vmatpush1.bf16.msra.mxu0 0
      %1367 = vmatprep.subr.bf16.mxu0 0
      %1368 = vmatpush1.bf16.msra.mxu0 0
      %1369 = vmatprep.subr.bf16.mxu0 0
      %1370 = vmatpush1.bf16.msra.mxu0 0
      %1371 = vmatprep.subr.bf16.mxu0 0
      %1372 = vmatpush1.bf16.msra.mxu0 0
      %1373 = vmatprep.subr.bf16.mxu0 0
      %1374 = vmatpush1.bf16.msra.mxu0 0
      %1375 = vmatprep.subr.bf16.mxu0 0
      %1376 = vmatpush1.bf16.msra.mxu0 0
      %1377 = vmatprep.mubr.bf16.mxu0 0
      %1378 = vmatmul.mubr.bf16.gmra.mrb[0].mxu0 %v1343
      %v1379 = vpop.f32.mrb[0].mxu0
      %v1380 = vadd.f32 0.0, %v1379
      %v1381 = vpop.f32.mrb[0].mxu0
      %v1382 = vadd.f32 0.0, %v1381
      %v1383 = vpop.f32.mrb[0].mxu0
      %v1384 = vpop.f32.mrb[0].mxu0
      %1385 = vdwg.mxu0
      %v1386 = vadd.f32 %v1334, %v1380
      %v1387 = vadd.f32 %v1336, %v1382
      %1388 = vrot.lane.b32.xlu0 %v1238, 104
      %v1389 = vpop.permute.xlu0 %1388
      %1390 = vrot.lane.b32.xlu0 %v972, 108
      %v1391 = vpop.permute.xlu0 %1390
      %1392 = vrot.lane.b32.xlu0 %v973, 108
      %v1393 = vpop.permute.xlu0 %1392
      %v1394 = vsel %vm672, %v1391, %v1393
      %v1396 = vsel %vm992, %v1389, 0
      %v1399 = vsel %vm996, %v1394, 0
      %v1402 = vsel %vm996, %v1393, 0
      %1404 = vmatprep.subr.bf16.mxu0 %v1402
      %1405 = vmatpush1.bf16.msra.mxu0 %v1399
      %1406 = vmatprep.subr.bf16.mxu0 0
      %1407 = vmatpush1.bf16.msra.mxu0 0
      %1408 = vmatprep.subr.bf16.mxu0 0
      %1409 = vmatpush1.bf16.msra.mxu0 0
      %1410 = vmatprep.subr.bf16.mxu0 0
      %1411 = vmatpush1.bf16.msra.mxu0 0
      %1412 = vmatprep.subr.bf16.mxu0 0
      %1413 = vmatpush1.bf16.msra.mxu0 0
      %1414 = vmatprep.subr.bf16.mxu0 0
      %1415 = vmatpush1.bf16.msra.mxu0 0
      %1416 = vmatprep.subr.bf16.mxu0 0
      %1417 = vmatpush1.bf16.msra.mxu0 0
      %1418 = vmatprep.subr.bf16.mxu0 0
      %1419 = vmatpush1.bf16.msra.mxu0 0
      %1420 = vmatprep.subr.bf16.mxu0 0
      %1421 = vmatpush1.bf16.msra.mxu0 0
      %1422 = vmatprep.subr.bf16.mxu0 0
      %1423 = vmatpush1.bf16.msra.mxu0 0
      %1424 = vmatprep.subr.bf16.mxu0 0
      %1425 = vmatpush1.bf16.msra.mxu0 0
      %1426 = vmatprep.subr.bf16.mxu0 0
      %1427 = vmatpush1.bf16.msra.mxu0 0
      %1428 = vmatprep.subr.bf16.mxu0 0
      %1429 = vmatpush1.bf16.msra.mxu0 0
      %1430 = vmatprep.subr.bf16.mxu0 0
      %1431 = vmatpush1.bf16.msra.mxu0 0
      %1432 = vmatprep.subr.bf16.mxu0 0
      %1433 = vmatpush1.bf16.msra.mxu0 0
      %1434 = vmatprep.subr.bf16.mxu0 0
      %1435 = vmatpush1.bf16.msra.mxu0 0
      %1436 = vmatprep.mubr.bf16.mxu0 0
      %1437 = vmatmul.mubr.bf16.gmra.mrb[0].mxu0 %v1396
      %v1438 = vpop.f32.mrb[0].mxu0
      %v1439 = vadd.f32 0.0, %v1438
      %v1440 = vpop.f32.mrb[0].mxu0
      %v1441 = vadd.f32 0.0, %v1440
      %v1442 = vpop.f32.mrb[0].mxu0
      %v1443 = vpop.f32.mrb[0].mxu0
      %1444 = vdwg.mxu0
      %v1445 = vadd.f32 %v1386, %v1439
      %v1446 = vadd.f32 %v1387, %v1441
      %v1447 = vld [vmem:[%s5] sm:$0xf]
      %1449 = vset.pattern.permute.xlu0 0
      %1450 = vperm.xlu0 %1449, %v1447
      %v1451 = vpop.permute.xlu0 %1450
      %v1453 = vadd.f32 %v1445, %v1451
      %v1454 = vadd.f32 %v1446, %v1451
      %v1455 = vmax.f32 %v1453, 0.0
      %v1456 = vmax.f32 %v1454, 0.0
      %v1459 = vcombine.low %v1455, %v1456
      %s1461 = scalar_lea.vmem %s304, 8
      %1462 = vst.msk [vmem:[%s1461] sm:$0xff] %vm1227, %v1459
      %s1463 = scalar_lea.vmem %s4, 4
      %v1464 = vld [vmem:[%s1463] sm:$0x3]
      %v1467 = vunpack.c.l.s4 1983009808
      %v1468 = vunpack.c.0.s8 %v1467
      %v1469 = vlaneseq
      %v1470 = vshrl.u32 %v1469, 7
      %v1471 = vsub.s32 %v1468, %v1470
      %v1472 = vrot.slane %v1464, %v1471
      %1473 = vrot.lane.b32.xlu0 %v1472, 120
      %v1474 = vpop.permute.xlu0 %1473
      %v1476 = vsel %vm992, %v1474, 0
      %1478 = vmatprep.subr.bf16.mxu0 %v1167
      %1479 = vmatpush1.bf16.msra.mxu0 %v1164
      %1480 = vmatprep.subr.bf16.mxu0 0
      %1481 = vmatpush1.bf16.msra.mxu0 0
      %1482 = vmatprep.subr.bf16.mxu0 0
      %1483 = vmatpush1.bf16.msra.mxu0 0
      %1484 = vmatprep.subr.bf16.mxu0 0
      %1485 = vmatpush1.bf16.msra.mxu0 0
      %1486 = vmatprep.subr.bf16.mxu0 0
      %1487 = vmatpush1.bf16.msra.mxu0 0
      %1488 = vmatprep.subr.bf16.mxu0 0
      %1489 = vmatpush1.bf16.msra.mxu0 0
      %1490 = vmatprep.subr.bf16.mxu0 0
      %1491 = vmatpush1.bf16.msra.mxu0 0
      %1492 = vmatprep.subr.bf16.mxu0 0
      %1493 = vmatpush1.bf16.msra.mxu0 0
      %1494 = vmatprep.subr.bf16.mxu0 0
      %1495 = vmatpush1.bf16.msra.mxu0 0
      %1496 = vmatprep.subr.bf16.mxu0 0
      %1497 = vmatpush1.bf16.msra.mxu0 0
      %1498 = vmatprep.subr.bf16.mxu0 0
      %1499 = vmatpush1.bf16.msra.mxu0 0
      %1500 = vmatprep.subr.bf16.mxu0 0
      %1501 = vmatpush1.bf16.msra.mxu0 0
      %1502 = vmatprep.subr.bf16.mxu0 0
      %1503 = vmatpush1.bf16.msra.mxu0 0
      %1504 = vmatprep.subr.bf16.mxu0 0
      %1505 = vmatpush1.bf16.msra.mxu0 0
      %1506 = vmatprep.subr.bf16.mxu0 0
      %1507 = vmatpush1.bf16.msra.mxu0 0
      %1508 = vmatprep.subr.bf16.mxu0 0
      %1509 = vmatpush1.bf16.msra.mxu0 0
      %1510 = vmatprep.mubr.bf16.mxu0 0
      %1511 = vmatmul.mubr.bf16.gmra.mrb[0].mxu0 %v1476
      %v1512 = vpop.f32.mrb[0].mxu0
      %v1513 = vadd.f32 0.0, %v1512
      %v1514 = vpop.f32.mrb[0].mxu0
      %v1515 = vadd.f32 0.0, %v1514
      %v1516 = vpop.f32.mrb[0].mxu0
      %v1517 = vpop.f32.mrb[0].mxu0
      %1518 = vdwg.mxu0
      %v1520 = vsel %vm992, %v1464, 0
      %1522 = vmatprep.subr.bf16.mxu0 %v1108
      %1523 = vmatpush1.bf16.msra.mxu0 %v1105
      %1524 = vmatprep.subr.bf16.mxu0 0
      %1525 = vmatpush1.bf16.msra.mxu0 0
      %1526 = vmatprep.subr.bf16.mxu0 0
      %1527 = vmatpush1.bf16.msra.mxu0 0
      %1528 = vmatprep.subr.bf16.mxu0 0
      %1529 = vmatpush1.bf16.msra.mxu0 0
      %1530 = vmatprep.subr.bf16.mxu0 0
      %1531 = vmatpush1.bf16.msra.mxu0 0
      %1532 = vmatprep.subr.bf16.mxu0 0
      %1533 = vmatpush1.bf16.msra.mxu0 0
      %1534 = vmatprep.subr.bf16.mxu0 0
      %1535 = vmatpush1.bf16.msra.mxu0 0
      %1536 = vmatprep.subr.bf16.mxu0 0
      %1537 = vmatpush1.bf16.msra.mxu0 0
      %1538 = vmatprep.subr.bf16.mxu0 0
      %1539 = vmatpush1.bf16.msra.mxu0 0
      %1540 = vmatprep.subr.bf16.mxu0 0
      %1541 = vmatpush1.bf16.msra.mxu0 0
      %1542 = vmatprep.subr.bf16.mxu0 0
      %1543 = vmatpush1.bf16.msra.mxu0 0
      %1544 = vmatprep.subr.bf16.mxu0 0
      %1545 = vmatpush1.bf16.msra.mxu0 0
      %1546 = vmatprep.subr.bf16.mxu0 0
      %1547 = vmatpush1.bf16.msra.mxu0 0
      %1548 = vmatprep.subr.bf16.mxu0 0
      %1549 = vmatpush1.bf16.msra.mxu0 0
      %1550 = vmatprep.subr.bf16.mxu0 0
      %1551 = vmatpush1.bf16.msra.mxu0 0
      %1552 = vmatprep.subr.bf16.mxu0 0
      %1553 = vmatpush1.bf16.msra.mxu0 0
      %1554 = vmatprep.mubr.bf16.mxu0 0
      %1555 = vmatmul.mubr.bf16.gmra.mrb[0].mxu0 %v1520
      %v1556 = vpop.f32.mrb[0].mxu0
      %v1557 = vadd.f32 %v1513, %v1556
      %v1558 = vpop.f32.mrb[0].mxu0
      %v1559 = vadd.f32 %v1515, %v1558
      %v1560 = vpop.f32.mrb[0].mxu0
      %v1561 = vpop.f32.mrb[0].mxu0
      %1562 = vdwg.mxu0
      %1563 = vrot.lane.b32.xlu0 %v1472, 112
      %v1564 = vpop.permute.xlu0 %1563
      %1565 = vrot.lane.b32.xlu0 %v972, 92
      %v1566 = vpop.permute.xlu0 %1565
      %1567 = vrot.lane.b32.xlu0 %v973, 92
      %v1568 = vpop.permute.xlu0 %1567
      %v1569 = vsel %vm746, %v1566, %v1568
      %v1571 = vsel %vm992, %v1564, 0
      %v1574 = vsel %vm996, %v1569, 0
      %v1577 = vsel %vm996, %v1568, 0
      %1579 = vmatprep.subr.bf16.mxu0 %v1577
      %1580 = vmatpush1.bf16.msra.mxu0 %v1574
      %1581 = vmatprep.subr.bf16.mxu0 0
      %1582 = vmatpush1.bf16.msra.mxu0 0
      %1583 = vmatprep.subr.bf16.mxu0 0
      %1584 = vmatpush1.bf16.msra.mxu0 0
      %1585 = vmatprep.subr.bf16.mxu0 0
      %1586 = vmatpush1.bf16.msra.mxu0 0
      %1587 = vmatprep.subr.bf16.mxu0 0
      %1588 = vmatpush1.bf16.msra.mxu0 0
      %1589 = vmatprep.subr.bf16.mxu0 0
      %1590 = vmatpush1.bf16.msra.mxu0 0
      %1591 = vmatprep.subr.bf16.mxu0 0
      %1592 = vmatpush1.bf16.msra.mxu0 0
      %1593 = vmatprep.subr.bf16.mxu0 0
      %1594 = vmatpush1.bf16.msra.mxu0 0
      %1595 = vmatprep.subr.bf16.mxu0 0
      %1596 = vmatpush1.bf16.msra.mxu0 0
      %1597 = vmatprep.subr.bf16.mxu0 0
      %1598 = vmatpush1.bf16.msra.mxu0 0
      %1599 = vmatprep.subr.bf16.mxu0 0
      %1600 = vmatpush1.bf16.msra.mxu0 0
      %1601 = vmatprep.subr.bf16.mxu0 0
      %1602 = vmatpush1.bf16.msra.mxu0 0
      %1603 = vmatprep.subr.bf16.mxu0 0
      %1604 = vmatpush1.bf16.msra.mxu0 0
      %1605 = vmatprep.subr.bf16.mxu0 0
      %1606 = vmatpush1.bf16.msra.mxu0 0
      %1607 = vmatprep.subr.bf16.mxu0 0
      %1608 = vmatpush1.bf16.msra.mxu0 0
      %1609 = vmatprep.subr.bf16.mxu0 0
      %1610 = vmatpush1.bf16.msra.mxu0 0
      %1611 = vmatprep.mubr.bf16.mxu0 0
      %1612 = vmatmul.mubr.bf16.gmra.mrb[0].mxu0 %v1571
      %v1613 = vpop.f32.mrb[0].mxu0
      %v1614 = vadd.f32 0.0, %v1613
      %v1615 = vpop.f32.mrb[0].mxu0
      %v1616 = vadd.f32 0.0, %v1615
      %v1617 = vpop.f32.mrb[0].mxu0
      %v1618 = vpop.f32.mrb[0].mxu0
      %1619 = vdwg.mxu0
      %v1620 = vadd.f32 %v1557, %v1614
      %v1621 = vadd.f32 %v1559, %v1616
      %1622 = vrot.lane.b32.xlu0 %v1472, 104
      %v1623 = vpop.permute.xlu0 %1622
      %1624 = vrot.lane.b32.xlu0 %v972, 91
      %v1625 = vpop.permute.xlu0 %1624
      %1626 = vrot.lane.b32.xlu0 %v973, 91
      %v1627 = vpop.permute.xlu0 %1626
      %v1628 = vsel %vm820, %v1625, %v1627
      %v1630 = vsel %vm992, %v1623, 0
      %v1633 = vsel %vm996, %v1628, 0
      %v1636 = vsel %vm996, %v1627, 0
      %1638 = vmatprep.subr.bf16.mxu0 %v1636
      %1639 = vmatpush1.bf16.msra.mxu0 %v1633
      %1640 = vmatprep.subr.bf16.mxu0 0
      %1641 = vmatpush1.bf16.msra.mxu0 0
      %1642 = vmatprep.subr.bf16.mxu0 0
      %1643 = vmatpush1.bf16.msra.mxu0 0
      %1644 = vmatprep.subr.bf16.mxu0 0
      %1645 = vmatpush1.bf16.msra.mxu0 0
      %1646 = vmatprep.subr.bf16.mxu0 0
      %1647 = vmatpush1.bf16.msra.mxu0 0
      %1648 = vmatprep.subr.bf16.mxu0 0
      %1649 = vmatpush1.bf16.msra.mxu0 0
      %1650 = vmatprep.subr.bf16.mxu0 0
      %1651 = vmatpush1.bf16.msra.mxu0 0
      %1652 = vmatprep.subr.bf16.mxu0 0
      %1653 = vmatpush1.bf16.msra.mxu0 0
      %1654 = vmatprep.subr.bf16.mxu0 0
      %1655 = vmatpush1.bf16.msra.mxu0 0
      %1656 = vmatprep.subr.bf16.mxu0 0
      %1657 = vmatpush1.bf16.msra.mxu0 0
      %1658 = vmatprep.subr.bf16.mxu0 0
      %1659 = vmatpush1.bf16.msra.mxu0 0
      %1660 = vmatprep.subr.bf16.mxu0 0
      %1661 = vmatpush1.bf16.msra.mxu0 0
      %1662 = vmatprep.subr.bf16.mxu0 0
      %1663 = vmatpush1.bf16.msra.mxu0 0
      %1664 = vmatprep.subr.bf16.mxu0 0
      %1665 = vmatpush1.bf16.msra.mxu0 0
      %1666 = vmatprep.subr.bf16.mxu0 0
      %1667 = vmatpush1.bf16.msra.mxu0 0
      %1668 = vmatprep.subr.bf16.mxu0 0
      %1669 = vmatpush1.bf16.msra.mxu0 0
      %1670 = vmatprep.mubr.bf16.mxu0 0
      %1671 = vmatmul.mubr.bf16.gmra.mrb[0].mxu0 %v1630
      %v1672 = vpop.f32.mrb[0].mxu0
      %v1673 = vadd.f32 0.0, %v1672
      %v1674 = vpop.f32.mrb[0].mxu0
      %v1675 = vadd.f32 0.0, %v1674
      %v1676 = vpop.f32.mrb[0].mxu0
      %v1677 = vpop.f32.mrb[0].mxu0
      %1678 = vdwg.mxu0
      %v1679 = vadd.f32 %v1620, %v1673
      %v1680 = vadd.f32 %v1621, %v1675
      %v1681 = vld [vmem:[%s5] sm:$0xf]
      %1683 = vset.pattern.permute.xlu0 0
      %1684 = vperm.xlu0 %1683, %v1681
      %v1685 = vpop.permute.xlu0 %1684
      %v1687 = vadd.f32 %v1679, %v1685
      %v1688 = vadd.f32 %v1680, %v1685
      %v1689 = vmax.f32 %v1687, 0.0
      %v1690 = vmax.f32 %v1688, 0.0
      %v1693 = vcombine.low %v1689, %v1690
      %s1695 = scalar_lea.vmem %s304, 16
      %1696 = vst.msk [vmem:[%s1695] sm:$0xff] %vm1227, %v1693
      %s1697 = scalar_lea.vmem %s4, 6
      %v1698 = vld [vmem:[%s1697] sm:$0x3]
      %v1701 = vunpack.c.l.s4 1983009808
      %v1702 = vunpack.c.0.s8 %v1701
      %v1703 = vlaneseq
      %v1704 = vshrl.u32 %v1703, 7
      %v1705 = vsub.s32 %v1702, %v1704
      %v1706 = vrot.slane %v1698, %v1705
      %1707 = vrot.lane.b32.xlu0 %v1706, 120
      %v1708 = vpop.permute.xlu0 %1707
      %v1710 = vsel %vm992, %v1708, 0
      %1712 = vmatprep.subr.bf16.mxu0 %v1402
      %1713 = vmatpush1.bf16.msra.mxu0 %v1399
      %1714 = vmatprep.subr.bf16.mxu0 0
      %1715 = vmatpush1.bf16.msra.mxu0 0
      %1716 = vmatprep.subr.bf16.mxu0 0
      %1717 = vmatpush1.bf16.msra.mxu0 0
      %1718 = vmatprep.subr.bf16.mxu0 0
      %1719 = vmatpush1.bf16.msra.mxu0 0
      %1720 = vmatprep.subr.bf16.mxu0 0
      %1721 = vmatpush1.bf16.msra.mxu0 0
      %1722 = vmatprep.subr.bf16.mxu0 0
      %1723 = vmatpush1.bf16.msra.mxu0 0
      %1724 = vmatprep.subr.bf16.mxu0 0
      %1725 = vmatpush1.bf16.msra.mxu0 0
      %1726 = vmatprep.subr.bf16.mxu0 0
      %1727 = vmatpush1.bf16.msra.mxu0 0
      %1728 = vmatprep.subr.bf16.mxu0 0
      %1729 = vmatpush1.bf16.msra.mxu0 0
      %1730 = vmatprep.subr.bf16.mxu0 0
      %1731 = vmatpush1.bf16.msra.mxu0 0
      %1732 = vmatprep.subr.bf16.mxu0 0
      %1733 = vmatpush1.bf16.msra.mxu0 0
      %1734 = vmatprep.subr.bf16.mxu0 0
      %1735 = vmatpush1.bf16.msra.mxu0 0
      %1736 = vmatprep.subr.bf16.mxu0 0
      %1737 = vmatpush1.bf16.msra.mxu0 0
      %1738 = vmatprep.subr.bf16.mxu0 0
      %1739 = vmatpush1.bf16.msra.mxu0 0
      %1740 = vmatprep.subr.bf16.mxu0 0
      %1741 = vmatpush1.bf16.msra.mxu0 0
      %1742 = vmatprep.subr.bf16.mxu0 0
      %1743 = vmatpush1.bf16.msra.mxu0 0
      %1744 = vmatprep.mubr.bf16.mxu0 0
      %1745 = vmatmul.mubr.bf16.gmra.mrb[0].mxu0 %v1710
      %v1746 = vpop.f32.mrb[0].mxu0
      %v1747 = vadd.f32 0.0, %v1746
      %v1748 = vpop.f32.mrb[0].mxu0
      %v1749 = vadd.f32 0.0, %v1748
      %v1750 = vpop.f32.mrb[0].mxu0
      %v1751 = vpop.f32.mrb[0].mxu0
      %1752 = vdwg.mxu0
      %v1754 = vsel %vm992, %v1698, 0
      %1756 = vmatprep.subr.bf16.mxu0 %v1167
      %1757 = vmatpush1.bf16.msra.mxu0 %v1164
      %1758 = vmatprep.subr.bf16.mxu0 0
      %1759 = vmatpush1.bf16.msra.mxu0 0
      %1760 = vmatprep.subr.bf16.mxu0 0
      %1761 = vmatpush1.bf16.msra.mxu0 0
      %1762 = vmatprep.subr.bf16.mxu0 0
      %1763 = vmatpush1.bf16.msra.mxu0 0
      %1764 = vmatprep.subr.bf16.mxu0 0
      %1765 = vmatpush1.bf16.msra.mxu0 0
      %1766 = vmatprep.subr.bf16.mxu0 0
      %1767 = vmatpush1.bf16.msra.mxu0 0
      %1768 = vmatprep.subr.bf16.mxu0 0
      %1769 = vmatpush1.bf16.msra.mxu0 0
      %1770 = vmatprep.subr.bf16.mxu0 0
      %1771 = vmatpush1.bf16.msra.mxu0 0
      %1772 = vmatprep.subr.bf16.mxu0 0
      %1773 = vmatpush1.bf16.msra.mxu0 0
      %1774 = vmatprep.subr.bf16.mxu0 0
      %1775 = vmatpush1.bf16.msra.mxu0 0
      %1776 = vmatprep.subr.bf16.mxu0 0
      %1777 = vmatpush1.bf16.msra.mxu0 0
      %1778 = vmatprep.subr.bf16.mxu0 0
      %1779 = vmatpush1.bf16.msra.mxu0 0
      %1780 = vmatprep.subr.bf16.mxu0 0
      %1781 = vmatpush1.bf16.msra.mxu0 0
      %1782 = vmatprep.subr.bf16.mxu0 0
      %1783 = vmatpush1.bf16.msra.mxu0 0
      %1784 = vmatprep.subr.bf16.mxu0 0
      %1785 = vmatpush1.bf16.msra.mxu0 0
      %1786 = vmatprep.subr.bf16.mxu0 0
      %1787 = vmatpush1.bf16.msra.mxu0 0
      %1788 = vmatprep.mubr.bf16.mxu0 0
      %1789 = vmatmul.mubr.bf16.gmra.mrb[0].mxu0 %v1754
      %v1790 = vpop.f32.mrb[0].mxu0
      %v1791 = vadd.f32 %v1747, %v1790
      %v1792 = vpop.f32.mrb[0].mxu0
      %v1793 = vadd.f32 %v1749, %v1792
      %v1794 = vpop.f32.mrb[0].mxu0
      %v1795 = vpop.f32.mrb[0].mxu0
      %1796 = vdwg.mxu0
      %1797 = vrot.lane.b32.xlu0 %v1706, 112
      %v1798 = vpop.permute.xlu0 %1797
      %v1800 = vsel %vm992, %v1798, 0
      %1802 = vmatprep.subr.bf16.mxu0 %v1636
      %1803 = vmatpush1.bf16.msra.mxu0 %v1633
      %1804 = vmatprep.subr.bf16.mxu0 0
      %1805 = vmatpush1.bf16.msra.mxu0 0
      %1806 = vmatprep.subr.bf16.mxu0 0
      %1807 = vmatpush1.bf16.msra.mxu0 0
      %1808 = vmatprep.subr.bf16.mxu0 0
      %1809 = vmatpush1.bf16.msra.mxu0 0
      %1810 = vmatprep.subr.bf16.mxu0 0
      %1811 = vmatpush1.bf16.msra.mxu0 0
      %1812 = vmatprep.subr.bf16.mxu0 0
      %1813 = vmatpush1.bf16.msra.mxu0 0
      %1814 = vmatprep.subr.bf16.mxu0 0
      %1815 = vmatpush1.bf16.msra.mxu0 0
      %1816 = vmatprep.subr.bf16.mxu0 0
      %1817 = vmatpush1.bf16.msra.mxu0 0
      %1818 = vmatprep.subr.bf16.mxu0 0
      %1819 = vmatpush1.bf16.msra.mxu0 0
      %1820 = vmatprep.subr.bf16.mxu0 0
      %1821 = vmatpush1.bf16.msra.mxu0 0
      %1822 = vmatprep.subr.bf16.mxu0 0
      %1823 = vmatpush1.bf16.msra.mxu0 0
      %1824 = vmatprep.subr.bf16.mxu0 0
      %1825 = vmatpush1.bf16.msra.mxu0 0
      %1826 = vmatprep.subr.bf16.mxu0 0
      %1827 = vmatpush1.bf16.msra.mxu0 0
      %1828 = vmatprep.subr.bf16.mxu0 0
      %1829 = vmatpush1.bf16.msra.mxu0 0
      %1830 = vmatprep.subr.bf16.mxu0 0
      %1831 = vmatpush1.bf16.msra.mxu0 0
      %1832 = vmatprep.subr.bf16.mxu0 0
      %1833 = vmatpush1.bf16.msra.mxu0 0
      %1834 = vmatprep.mubr.bf16.mxu0 0
      %1835 = vmatmul.mubr.bf16.gmra.mrb[0].mxu0 %v1800
      %v1836 = vpop.f32.mrb[0].mxu0
      %v1837 = vadd.f32 0.0, %v1836
      %v1838 = vpop.f32.mrb[0].mxu0
      %v1839 = vadd.f32 0.0, %v1838
      %v1840 = vpop.f32.mrb[0].mxu0
      %v1841 = vpop.f32.mrb[0].mxu0
      %1842 = vdwg.mxu0
      %v1843 = vadd.f32 %v1791, %v1837
      %v1844 = vadd.f32 %v1793, %v1839
      %1845 = vrot.lane.b32.xlu0 %v1706, 104
      %v1846 = vpop.permute.xlu0 %1845
      %1847 = vrot.lane.b32.xlu0 %v972, 90
      %v1848 = vpop.permute.xlu0 %1847
      %1849 = vrot.lane.b32.xlu0 %v973, 90
      %v1850 = vpop.permute.xlu0 %1849
      %v1851 = vsel %vm894, %v1848, %v1850
      %v1853 = vsel %vm992, %v1846, 0
      %v1856 = vsel %vm996, %v1851, 0
      %v1859 = vsel %vm996, %v1850, 0
      %1861 = vmatprep.subr.bf16.mxu0 %v1859
      %1862 = vmatpush1.bf16.msra.mxu0 %v1856
      %1863 = vmatprep.subr.bf16.mxu0 0
      %1864 = vmatpush1.bf16.msra.mxu0 0
      %1865 = vmatprep.subr.bf16.mxu0 0
      %1866 = vmatpush1.bf16.msra.mxu0 0
      %1867 = vmatprep.subr.bf16.mxu0 0
      %1868 = vmatpush1.bf16.msra.mxu0 0
      %1869 = vmatprep.subr.bf16.mxu0 0
      %1870 = vmatpush1.bf16.msra.mxu0 0
      %1871 = vmatprep.subr.bf16.mxu0 0
      %1872 = vmatpush1.bf16.msra.mxu0 0
      %1873 = vmatprep.subr.bf16.mxu0 0
      %1874 = vmatpush1.bf16.msra.mxu0 0
      %1875 = vmatprep.subr.bf16.mxu0 0
      %1876 = vmatpush1.bf16.msra.mxu0 0
      %1877 = vmatprep.subr.bf16.mxu0 0
      %1878 = vmatpush1.bf16.msra.mxu0 0
      %1879 = vmatprep.subr.bf16.mxu0 0
      %1880 = vmatpush1.bf16.msra.mxu0 0
      %1881 = vmatprep.subr.bf16.mxu0 0
      %1882 = vmatpush1.bf16.msra.mxu0 0
      %1883 = vmatprep.subr.bf16.mxu0 0
      %1884 = vmatpush1.bf16.msra.mxu0 0
      %1885 = vmatprep.subr.bf16.mxu0 0
      %1886 = vmatpush1.bf16.msra.mxu0 0
      %1887 = vmatprep.subr.bf16.mxu0 0
      %1888 = vmatpush1.bf16.msra.mxu0 0
      %1889 = vmatprep.subr.bf16.mxu0 0
      %1890 = vmatpush1.bf16.msra.mxu0 0
      %1891 = vmatprep.subr.bf16.mxu0 0
      %1892 = vmatpush1.bf16.msra.mxu0 0
      %1893 = vmatprep.mubr.bf16.mxu0 0
      %1894 = vmatmul.mubr.bf16.gmra.mrb[0].mxu0 %v1853
      %v1895 = vpop.f32.mrb[0].mxu0
      %v1896 = vadd.f32 0.0, %v1895
      %v1897 = vpop.f32.mrb[0].mxu0
      %v1898 = vadd.f32 0.0, %v1897
      %v1899 = vpop.f32.mrb[0].mxu0
      %v1900 = vpop.f32.mrb[0].mxu0
      %1901 = vdwg.mxu0
      %v1902 = vadd.f32 %v1843, %v1896
      %v1903 = vadd.f32 %v1844, %v1898
      %v1904 = vld [vmem:[%s5] sm:$0xf]
      %1906 = vset.pattern.permute.xlu0 0
      %1907 = vperm.xlu0 %1906, %v1904
      %v1908 = vpop.permute.xlu0 %1907
      %v1910 = vadd.f32 %v1902, %v1908
      %v1911 = vadd.f32 %v1903, %v1908
      %v1912 = vmax.f32 %v1910, 0.0
      %v1913 = vmax.f32 %v1911, 0.0
      %v1916 = vcombine.low %v1912, %v1913
      %s1918 = scalar_lea.vmem %s304, 24
      %1919 = vst.msk [vmem:[%s1918] sm:$0xff] %vm1227, %v1916
      %p1920 = scmp.lt.s32.totalorder %s21, 1
      %s1921 = scalar_select %p1920, %s21, 1
      %p1922 = scmp.lt.s32.totalorder %s22, 1
      %s1923 = scalar_select %p1922, %s22, 1
      %s1924 = smul.addr %s1923, 8
      %s1925 = smul.addr %s1921, 16
      %s1926 = sadd.s32 %s1924, %s1925
      %s1927 = smul.addr %s1926, 4
      %s1928 = scalar_lea.vmem %s6, %s1927
      // Predicated region
      $region45: #{decoder_block_forward.1} parent=43 // pred_check
        %p1929 = pneg %p187
      $region46: #{decoder_block_forward.1} parent=43 // pred_check_branch
        %1931 = sbr.rel (%p1929) target = $region48
      $region47: #{decoder_block_forward.1} parent=43 // pred_region
        _
      $region48: #{decoder_block_forward.1} parent=43 // pred_fallthru
        _
    $region44: #{decoder_block_forward.1} parent=5 // pred_fallthru
      _
    %p1932 = scmp.le.s32.totalorder 2, %s12
    // Predicated region
    $region49: #{decoder_block_forward.1} parent=5 // pred_check
      %p1933 = pneg %p1932
    $region50: #{decoder_block_forward.1} parent=5 // pred_check_branch
      %1935 = sbr.rel (%p1933) target = $region52
    $region51: #{decoder_block_forward.1} parent=5 // pred_region
      %s1936 = ssub.s32 %s12, 2
      // Predicated region
      $region53: #{decoder_block_forward.1} parent=51 // pred_check
        %p1937 = pneg %p193
      $region54: #{decoder_block_forward.1} parent=51 // pred_check_branch
        %1939 = sbr.rel (%p1937) target = $region56
      $region55: #{decoder_block_forward.1} parent=51 // pred_region
        %p1940 = scmp.lt.s32.totalorder %s23, 1
        %s1941 = scalar_select %p1940, %s23, 1
        %p1942 = scmp.lt.s32.totalorder %s24, 1
        %s1943 = scalar_select %p1942, %s24, 1
        %s1944 = smul.addr %s1943, 8
        %s1945 = smul.addr %s1941, 16
        %s1946 = sadd.s32 %s1944, %s1945
        %s1947 = smul.addr %s1946, 4
        %s1948 = scalar_lea.vmem %s6, %s1947
      $region56: #{decoder_block_forward.1} parent=51 // pred_fallthru
        _
    $region52: #{decoder_block_forward.1} parent=5 // pred_fallthru
      _
  $region6: #{decoder_block_forward.1} parent=0 // loop_footer
    %s16 = sadd.s32 1, %s12
  $region7: #{decoder_block_forward.1} parent=0 // loop_footer_branch
    %11 = sbr.rel target = $region3
  $region8: #{decoder_block_forward.1} parent=0 // loop_exit
    _

</llo_original>
